<compile_context>
chip_gen: v7x
topology: tpu7x:2x2x1
jax: 0.10.0
libtpu: 0.0.40
codegen_flags: <defaults>
</compile_context>

<pallas_src>
import math
import functools

import jax
import jax.numpy as jnp
from jax.experimental import pallas as pl
from jax.experimental.pallas import tpu as pltpu


# ---------------------------------------------------------------------------
# kernel
# ---------------------------------------------------------------------------
def _encoder_kernel(x_ref, pe_ref,
                    wqkv_ref, bqkv_ref, wo_ref, bo_ref,
                    ln1g_ref, ln1b_ref,
                    w1_ref, b1_ref, w2_ref, b2_ref,
                    ln2g_ref, ln2b_ref,
                    out_ref, *, embed_scale, e_real, eps, fuse_out_transpose):
    B, D1, E_pad = x_ref.shape
    m = B * D1
    inv_e = 1.0 / e_real  # LayerNorm statistics use the REAL model dim

    # x * sqrt(E) + positional encoding (dropout = identity in eval mode).
    xs = x_ref[...] * embed_scale + pe_ref[...]               # (B, D1, Ep) f32
    xs2 = xs.reshape(m, E_pad)                                # (m, Ep)

    # --- fused QKV projection: one (m, Ep) @ (Ep, 3Ep) MXU matmul ---
    # NOTE: the 1/sqrt(E) score scale is pre-folded into wq/bq in the wrapper.
    qkv = jnp.dot(xs2.astype(jnp.bfloat16), wqkv_ref[...],
                  preferred_element_type=jnp.float32) + bqkv_ref[...]
    q = qkv[:, :E_pad].reshape(B, D1, E_pad).astype(jnp.bfloat16)
    k = qkv[:, E_pad:2 * E_pad].reshape(B, D1, E_pad).astype(jnp.bfloat16)
    v = qkv[:, 2 * E_pad:].reshape(B, D1, E_pad).astype(jnp.bfloat16)

    # --- single-head self-attention over the D1 (sequence) axis, batched over B
    # TODO(synk): flash-style (tq, tk) tiling with online softmax + accumulator
    # scratch once D1 reaches a few hundred (the (B, D1, D1) scores are O(D1^2)).
    s = jnp.einsum("bqd,bkd->bqk", q, k,
                   preferred_element_type=jnp.float32)        # (B, D1, D1) f32
    s = s - jnp.max(s, axis=-1, keepdims=True)
    p = jnp.exp(s)
    p = p / jnp.sum(p, axis=-1, keepdims=True)                # exact softmax
    attn = jnp.einsum("bqk,bkd->bqd", p.astype(jnp.bfloat16), v,
                      preferred_element_type=jnp.float32)     # (B, D1, Ep)
    attn = jnp.dot(attn.reshape(m, E_pad).astype(jnp.bfloat16), wo_ref[...],
                   preferred_element_type=jnp.float32) + bo_ref[...]

    # --- residual + LayerNorm1 (post-norm, PyTorch default norm_first=False)
    # Padded lanes hold exact zeros, so sums over Ep equal sums over the real E.
    h = xs2 + attn
    mu = jnp.sum(h, axis=-1, keepdims=True) * inv_e
    var = jnp.maximum(jnp.sum(h * h, axis=-1, keepdims=True) * inv_e - mu * mu, 0.0)
    h = (h - mu) * jax.lax.rsqrt(var + eps) * ln1g_ref[...] + ln1b_ref[...]

    # --- feed-forward (Linear -> ReLU -> Linear), residual + LayerNorm2 ---
    # TODO(synk): for very large E on v7x (64 MiB/TC VMEM) stream w1/w2 (and
    # wqkv) over the contraction axis (K-tiled grid / emit_pipeline) and mark
    # constant-index weight specs pipeline_mode=pl.Buffered(1) instead of full
    # double-buffered residency.
    f = jnp.dot(h.astype(jnp.bfloat16), w1_ref[...],
                preferred_element_type=jnp.float32) + b1_ref[...]
    f = jnp.maximum(f, 0.0)
    f = jnp.dot(f.astype(jnp.bfloat16), w2_ref[...],
                preferred_element_type=jnp.float32) + b2_ref[...]
    h2 = h + f
    mu2 = jnp.sum(h2, axis=-1, keepdims=True) * inv_e
    var2 = jnp.maximum(jnp.sum(h2 * h2, axis=-1, keepdims=True) * inv_e - mu2 * mu2, 0.0)
    y = (h2 - mu2) * jax.lax.rsqrt(var2 + eps) * ln2g_ref[...] + ln2b_ref[...]

    y = y.reshape(B, D1, E_pad)
    if fuse_out_transpose:
        # (B, D1, Ep) -> (D1, B, Ep): XLU work overlapping the MXU; saves the
        # wrapper transpose's extra HBM read+write pass.
        out_ref[...] = pltpu.einshape("bse->sbe", y)
    else:
        out_ref[...] = y


# ---------------------------------------------------------------------------
# helpers
# ---------------------------------------------------------------------------
def _round_up(n, m):
    return ((n + m - 1) // m) * m


def _pad2(a, rows, cols):
    pr, pc = rows - a.shape[0], cols - a.shape[1]
    if pr == 0 and pc == 0:
        return a
    return jnp.pad(a, ((0, pr), (0, pc)))


def _pad_last(a, last):
    pad = last - a.shape[-1]
    if pad == 0:
        return a
    width = [(0, 0)] * (a.ndim - 1) + [(0, pad)]
    return jnp.pad(a, width)


def _positional_encoding(length, d_model):
    # same construction as PositionalEncoding.pe[:length, 0, :]
    assert d_model % 2 == 0, "PositionalEncoding interleave assumes even d_model"
    position = jnp.arange(length, dtype=jnp.float32)[:, None]            # (L, 1)
    div_term = jnp.exp(jnp.arange(0, d_model, 2, dtype=jnp.float32)
                       * (-math.log(10000.0) / d_model))                 # (E/2,)
    sin = jnp.sin(position * div_term)
    cos = jnp.cos(position * div_term)
    return jnp.stack([sin, cos], axis=-1).reshape(length, d_model)       # interleave


def _vmem_budget_bytes():
    cap = 64 << 20  # conservative fallback (v7x per-TC physical VMEM)
    try:
        cap = int(pltpu.get_tpu_info().vmem_capacity_bytes)
    except Exception:
        pass
    # ~15% headroom for Mosaic internal scratch:
    #   v7x:  64 MiB -> ~54 MiB;   v5e/v6e: 128 MiB -> ~108 MiB.
    return max(32 << 20, min(int(cap * 0.85), 112 << 20))


def _pick_batch(D0, D1, E_pad, F_pad, weight_bytes, budget):
    """Number of D0 slices per grid step (must divide D0; output-block sublane
    dim must be a multiple of 8 or equal to D0)."""
    def step_bytes(b):
        m = b * D1
        io = 2 * 4 * (2 * m * E_pad + b * E_pad)          # dbl-buffered x/out/pe tiles
        inter = 4 * m * (12 * E_pad + 2 * F_pad + 2 * D1)  # qkv/q/k/v/attn/ffn/scores
        return io + inter

    cands = [d for d in range(1, D0 + 1)
             if D0 % d == 0 and (d == D0 or d % 8 == 0)]
    cands.sort(reverse=True)
    # resident weights are currently double-buffered (constant block index), so
    # count them at 2x when checking the fit.
    feas = [b for b in cands
            if 2 * weight_bytes + step_bytes(b) <= int(0.75 * budget)]
    if not feas:
        feas = [cands[-1]]
    b = feas[0]
    # v7x megacore: prefer >= 2 grid steps when each step still keeps the MXU
    # M dim (b*D1) >= 256 and the output block sublane dim a multiple of 8.
    for b2 in feas:
        if D0 // b2 >= 2 and b2 % 8 == 0 and b2 * D1 >= 256:
            b = b2
            break
    return b


def init_params(embedding_size, key):
    E = embedding_size
    ks = jax.random.split(key, 8)
    s = 0.1
    return {
        "wq": s * jax.random.normal(ks[0], (E, E), jnp.float32),
        "wk": s * jax.random.normal(ks[1], (E, E), jnp.float32),
        "wv": s * jax.random.normal(ks[2], (E, E), jnp.float32),
        "bq": s * jax.random.normal(ks[3], (1, E), jnp.float32),
        "bk": jnp.zeros((1, E), jnp.float32),
        "bv": jnp.zeros((1, E), jnp.float32),
        "wo": s * jax.random.normal(ks[4], (E, E), jnp.float32),
        "bo": jnp.zeros((1, E), jnp.float32),
        "ln1_g": jnp.ones((1, E), jnp.float32),
        "ln1_b": jnp.zeros((1, E), jnp.float32),
        "w1": s * jax.random.normal(ks[5], (E, 2 * E), jnp.float32),
        "b1": s * jax.random.normal(ks[6], (1, 2 * E), jnp.float32),
        "w2": s * jax.random.normal(ks[7], (2 * E, E), jnp.float32),
        "b2": jnp.zeros((1, E), jnp.float32),
        "ln2_g": jnp.ones((1, E), jnp.float32),
        "ln2_b": jnp.zeros((1, E), jnp.float32),
    }


# ---------------------------------------------------------------------------
# wrapper
# ---------------------------------------------------------------------------
def transformer_encoder_block(embedded_sequences, mask, params):
    # `mask` is accepted for signature parity but unused, exactly like the
    # PyTorch forward (it never passes it to the transformer encoder).
    del mask
    x = embedded_sequences.astype(jnp.float32)
    D0, D1, E = x.shape
    E_pad = _round_up(E, 128)        # lane-dense model dim
    F_pad = _round_up(2 * E, 128)    # lane-dense FFN hidden dim

    # ---- weight prep (done once in the wrapper; constant-folded by XLA) ----
    inv_sqrt_e = 1.0 / math.sqrt(E)
    wq = _pad2(params["wq"] * inv_sqrt_e, E_pad, E_pad)   # fold 1/sqrt(E) score scale
    wk = _pad2(params["wk"], E_pad, E_pad)
    wv = _pad2(params["wv"], E_pad, E_pad)
    bq = _pad2(params["bq"] * inv_sqrt_e, 1, E_pad)
    bk = _pad2(params["bk"], 1, E_pad)
    bv = _pad2(params["bv"], 1, E_pad)
    wqkv = jnp.concatenate([wq, wk, wv], axis=1).astype(jnp.bfloat16)   # (Ep, 3Ep)
    bqkv = jnp.concatenate([bq, bk, bv], axis=1)                        # (1, 3Ep) f32
    wo = _pad2(params["wo"], E_pad, E_pad).astype(jnp.bfloat16)
    bo = _pad2(params["bo"], 1, E_pad)
    w1 = _pad2(params["w1"], E_pad, F_pad).astype(jnp.bfloat16)
    b1 = _pad2(params["b1"], 1, F_pad)
    w2 = _pad2(params["w2"], F_pad, E_pad).astype(jnp.bfloat16)
    b2 = _pad2(params["b2"], 1, E_pad)
    # LN gamma/beta are zero-padded so padded lanes stay exactly zero end-to-end.
    ln1g = _pad2(params["ln1_g"], 1, E_pad)
    ln1b = _pad2(params["ln1_b"], 1, E_pad)
    ln2g = _pad2(params["ln2_g"], 1, E_pad)
    ln2b = _pad2(params["ln2_b"], 1, E_pad)

    pe = _pad_last(_positional_encoding(D0, E)[:, None, :], E_pad)      # (D0,1,Ep)
    x_p = _pad_last(x, E_pad)                                           # (D0,D1,Ep)

    weights = (wqkv, bqkv, wo, bo, ln1g, ln1b, w1, b1, w2, b2, ln2g, ln2b)
    weight_bytes = sum(int(a.size) * a.dtype.itemsize for a in weights)
    budget = _vmem_budget_bytes()
    B = _pick_batch(D0, D1, E_pad, F_pad, weight_bytes, budget)

    inputs = (x_p, pe) + weights
    embed_scale = math.sqrt(E)

    def run(fuse_out_transpose):
        kern = functools.partial(
            _encoder_kernel, embed_scale=embed_scale, e_real=float(E),
            eps=1e-5, fuse_out_transpose=fuse_out_transpose)
        slice3 = lambda n: (n, 0, 0)
        const2 = lambda n: (0, 0)        # weights: loaded once, VMEM-resident
        in_specs = ([pl.BlockSpec((B, D1, E_pad), slice3),
                     pl.BlockSpec((B, 1, E_pad), slice3)]
                    + [pl.BlockSpec(w.shape, const2) for w in weights])
        if fuse_out_transpose:
            out_shape = jax.ShapeDtypeStruct((D1, D0, E_pad), jnp.float32)
            out_spec = pl.BlockSpec((D1, B, E_pad), lambda n: (0, n, 0))
        else:
            out_shape = jax.ShapeDtypeStruct((D0, D1, E_pad), jnp.float32)
            out_spec = pl.BlockSpec((B, D1, E_pad), slice3)
        return pl.pallas_call(
            kern,
            out_shape=out_shape,
            grid_spec=pltpu.PrefetchScalarGridSpec(
                num_scalar_prefetch=0,
                grid=(D0 // B,),
                in_specs=in_specs,
                out_specs=out_spec),
            compiler_params=pltpu.CompilerParams(
                dimension_semantics=("parallel",),
                vmem_limit_bytes=budget),
        )(*inputs)

    try:
        out = run(True)                                   # (D1, D0, Ep) directly
    except Exception:
        # Fallback if the in-kernel (B,D1,E)->(D1,B,E) layout swap fails to
        # lower on this toolchain: single fused XLA transpose pass instead.
        out = jnp.transpose(run(False), (1, 0, 2))

    if E_pad != E:
        out = out[:, :, :E]
    return out


if __name__ == "__main__":
    key = jax.random.PRNGKey(0)
    k_x, k_p = jax.random.split(key)

    D0, D1, E = 2, 8, 32   # small shapes: (dim0, dim1, embedding_size)
    x = jax.random.normal(k_x, (D0, D1, E), dtype=jnp.float32)
    mask = None            # unused by the forward pass
    params = init_params(E, k_p)

    out = transformer_encoder_block(x, mask, params)
    out = jax.block_until_ready(out)
    assert out.shape == (D1, D0, E), out.shape
    assert bool(jnp.all(jnp.isfinite(out)))
    print("KERNEL_OK")
</pallas_src>

<mosaic_0001>
module attributes {stable_mosaic.version = 11 : i64} {
  func.func @_encoder_kernel(%arg0: i32, %arg1: memref<2x8x128xf32, #tpu.memory_space<vmem>>, %arg2: memref<2x1x128xf32, #tpu.memory_space<vmem>>, %arg3: memref<128x384xbf16, #tpu.memory_space<vmem>>, %arg4: memref<1x384xf32, #tpu.memory_space<vmem>>, %arg5: memref<128x128xbf16, #tpu.memory_space<vmem>>, %arg6: memref<1x128xf32, #tpu.memory_space<vmem>>, %arg7: memref<1x128xf32, #tpu.memory_space<vmem>>, %arg8: memref<1x128xf32, #tpu.memory_space<vmem>>, %arg9: memref<128x128xbf16, #tpu.memory_space<vmem>>, %arg10: memref<1x128xf32, #tpu.memory_space<vmem>>, %arg11: memref<128x128xbf16, #tpu.memory_space<vmem>>, %arg12: memref<1x128xf32, #tpu.memory_space<vmem>>, %arg13: memref<1x128xf32, #tpu.memory_space<vmem>>, %arg14: memref<1x128xf32, #tpu.memory_space<vmem>>, %arg15: memref<8x2x128xf32, #tpu.memory_space<vmem>>) attributes {dimension_semantics = [#tpu.dimension_semantics<parallel>], iteration_bounds = array<i64: 1>, scalar_prefetch = 0 : i64, scratch_operands = 0 : i64, tpu.core_type = #tpu.core_type<tc>, window_params = [{transform_indices = @transform_0, window_bounds = array<i64: 2, 8, 128>}, {transform_indices = @transform_1, window_bounds = array<i64: 2, 1, 128>}, {pipeline_mode = #tpu.pipeline_mode<synchronous>, transform_indices = @transform_2, window_bounds = array<i64: 128, 384>}, {pipeline_mode = #tpu.pipeline_mode<synchronous>, transform_indices = @transform_3, window_bounds = array<i64: 1, 384>}, {pipeline_mode = #tpu.pipeline_mode<synchronous>, transform_indices = @transform_4, window_bounds = array<i64: 128, 128>}, {pipeline_mode = #tpu.pipeline_mode<synchronous>, transform_indices = @transform_5, window_bounds = array<i64: 1, 128>}, {pipeline_mode = #tpu.pipeline_mode<synchronous>, transform_indices = @transform_6, window_bounds = array<i64: 1, 128>}, {pipeline_mode = #tpu.pipeline_mode<synchronous>, transform_indices = @transform_7, window_bounds = array<i64: 1, 128>}, {pipeline_mode = #tpu.pipeline_mode<synchronous>, transform_indices = @transform_8, window_bounds = array<i64: 128, 128>}, {pipeline_mode = #tpu.pipeline_mode<synchronous>, transform_indices = @transform_9, window_bounds = array<i64: 1, 128>}, {pipeline_mode = #tpu.pipeline_mode<synchronous>, transform_indices = @transform_10, window_bounds = array<i64: 128, 128>}, {pipeline_mode = #tpu.pipeline_mode<synchronous>, transform_indices = @transform_11, window_bounds = array<i64: 1, 128>}, {pipeline_mode = #tpu.pipeline_mode<synchronous>, transform_indices = @transform_12, window_bounds = array<i64: 1, 128>}, {pipeline_mode = #tpu.pipeline_mode<synchronous>, transform_indices = @transform_13, window_bounds = array<i64: 1, 128>}, {transform_indices = @transform_14, window_bounds = array<i64: 8, 2, 128>}]} {
    %c0 = arith.constant 0 : index
    %c0_0 = arith.constant 0 : index
    %c0_1 = arith.constant 0 : index
    %0 = vector.load %arg1[%c0, %c0_0, %c0_1] : memref<2x8x128xf32, #tpu.memory_space<vmem>>, vector<2x8x128xf32>
    %cst = arith.constant 5.65685415 : f32
    %1 = vector.broadcast %cst : f32 to vector<2x8x128xf32>
    %2 = arith.mulf %0, %1 : vector<2x8x128xf32>
    %c0_2 = arith.constant 0 : index
    %c0_3 = arith.constant 0 : index
    %c0_4 = arith.constant 0 : index
    %3 = vector.load %arg2[%c0_2, %c0_3, %c0_4] : memref<2x1x128xf32, #tpu.memory_space<vmem>>, vector<2x1x128xf32>
    %4 = vector.broadcast %3 : vector<2x1x128xf32> to vector<2x8x128xf32>
    %5 = arith.addf %2, %4 : vector<2x8x128xf32>
    %6 = vector.shape_cast %5 : vector<2x8x128xf32> to vector<16x128xf32>
    %7 = arith.truncf %6 : vector<16x128xf32> to vector<16x128xbf16>
    %c0_5 = arith.constant 0 : index
    %c0_6 = arith.constant 0 : index
    %8 = vector.load %arg3[%c0_5, %c0_6] : memref<128x384xbf16, #tpu.memory_space<vmem>>, vector<128x384xbf16>
    %cst_7 = arith.constant dense<0.000000e+00> : vector<16x384xf32>
    %9 = tpu.matmul %7, %8, %cst_7 {dimension_numbers = #tpu.dot_dimension_numbers<[1], [0], [0], [1], [0, 0, 1, 1], [], []>} : vector<16x128xbf16>, vector<128x384xbf16>, vector<16x384xf32> -> vector<16x384xf32>
    %c0_8 = arith.constant 0 : index
    %c0_9 = arith.constant 0 : index
    %10 = vector.load %arg4[%c0_8, %c0_9] : memref<1x384xf32, #tpu.memory_space<vmem>>, vector<1x384xf32>
    %11 = vector.broadcast %10 : vector<1x384xf32> to vector<16x384xf32>
    %12 = arith.addf %9, %11 : vector<16x384xf32>
    %13 = vector.extract_strided_slice %12 {offsets = [0, 0], sizes = [16, 128], strides = [1, 1]} : vector<16x384xf32> to vector<16x128xf32>
    %14 = vector.shape_cast %13 : vector<16x128xf32> to vector<2x8x128xf32>
    %15 = arith.truncf %14 : vector<2x8x128xf32> to vector<2x8x128xbf16>
    %16 = vector.extract_strided_slice %12 {offsets = [0, 128], sizes = [16, 128], strides = [1, 1]} : vector<16x384xf32> to vector<16x128xf32>
    %17 = vector.shape_cast %16 : vector<16x128xf32> to vector<2x8x128xf32>
    %18 = arith.truncf %17 : vector<2x8x128xf32> to vector<2x8x128xbf16>
    %19 = vector.extract_strided_slice %12 {offsets = [0, 256], sizes = [16, 128], strides = [1, 1]} : vector<16x384xf32> to vector<16x128xf32>
    %20 = vector.shape_cast %19 : vector<16x128xf32> to vector<2x8x128xf32>
    %21 = arith.truncf %20 : vector<2x8x128xf32> to vector<2x8x128xbf16>
    "tpu.trace_start"() <{level = 10 : i32, message = "bqd,bkd->bqk"}> : () -> ()
    %cst_10 = arith.constant dense<0.000000e+00> : vector<2x8x8xf32>
    %22 = tpu.matmul %15, %18, %cst_10 {dimension_numbers = #tpu.dot_dimension_numbers<[2], [2], [1], [1], [0, 0, 0, 1, 1, 1], [0], [0]>} : vector<2x8x128xbf16>, vector<2x8x128xbf16>, vector<2x8x8xf32> -> vector<2x8x8xf32>
    "tpu.trace_stop"() : () -> ()
    %cst_11 = arith.constant dense<0xFF800000> : vector<2x8xf32>
    %23 = vector.multi_reduction <maximumf>, %22, %cst_11 [2] : vector<2x8x8xf32> to vector<2x8xf32>
    %24 = vector.shape_cast %23 : vector<2x8xf32> to vector<2x8x1xf32>
    %25 = vector.broadcast %24 : vector<2x8x1xf32> to vector<2x8x8xf32>
    %26 = arith.subf %22, %25 : vector<2x8x8xf32>
    %27 = math.exp %26 : vector<2x8x8xf32>
    %cst_12 = arith.constant dense<0.000000e+00> : vector<2x8xf32>
    %28 = vector.multi_reduction <add>, %27, %cst_12 [2] : vector<2x8x8xf32> to vector<2x8xf32>
    %29 = vector.shape_cast %28 : vector<2x8xf32> to vector<2x8x1xf32>
    %30 = vector.broadcast %29 : vector<2x8x1xf32> to vector<2x8x8xf32>
    %31 = arith.divf %27, %30 : vector<2x8x8xf32>
    %32 = arith.truncf %31 : vector<2x8x8xf32> to vector<2x8x8xbf16>
    "tpu.trace_start"() <{level = 10 : i32, message = "bqk,bkd->bqd"}> : () -> ()
    %cst_13 = arith.constant dense<0.000000e+00> : vector<2x8x128xf32>
    %33 = tpu.matmul %32, %21, %cst_13 {dimension_numbers = #tpu.dot_dimension_numbers<[2], [1], [1], [2], [0, 0, 0, 1, 1, 2], [0], [0]>} : vector<2x8x8xbf16>, vector<2x8x128xbf16>, vector<2x8x128xf32> -> vector<2x8x128xf32>
    "tpu.trace_stop"() : () -> ()
    %34 = vector.shape_cast %33 : vector<2x8x128xf32> to vector<16x128xf32>
    %35 = arith.truncf %34 : vector<16x128xf32> to vector<16x128xbf16>
    %c0_14 = arith.constant 0 : index
    %c0_15 = arith.constant 0 : index
    %36 = vector.load %arg5[%c0_14, %c0_15] : memref<128x128xbf16, #tpu.memory_space<vmem>>, vector<128x128xbf16>
    %cst_16 = arith.constant dense<0.000000e+00> : vector<16x128xf32>
    %37 = tpu.matmul %35, %36, %cst_16 {dimension_numbers = #tpu.dot_dimension_numbers<[1], [0], [0], [1], [0, 0, 1, 1], [], []>} : vector<16x128xbf16>, vector<128x128xbf16>, vector<16x128xf32> -> vector<16x128xf32>
    %c0_17 = arith.constant 0 : index
    %c0_18 = arith.constant 0 : index
    %38 = vector.load %arg6[%c0_17, %c0_18] : memref<1x128xf32, #tpu.memory_space<vmem>>, vector<1x128xf32>
    %39 = vector.broadcast %38 : vector<1x128xf32> to vector<16x128xf32>
    %40 = arith.addf %37, %39 : vector<16x128xf32>
    %41 = arith.addf %6, %40 : vector<16x128xf32>
    %cst_19 = arith.constant dense<0.000000e+00> : vector<16xf32>
    %42 = vector.multi_reduction <add>, %41, %cst_19 [1] : vector<16x128xf32> to vector<16xf32>
    %43 = vector.shape_cast %42 : vector<16xf32> to vector<16x1xf32>
    %cst_20 = arith.constant 3.125000e-02 : f32
    %44 = vector.broadcast %cst_20 : f32 to vector<16x1xf32>
    %45 = arith.mulf %43, %44 : vector<16x1xf32>
    %46 = arith.mulf %41, %41 : vector<16x128xf32>
    %cst_21 = arith.constant dense<0.000000e+00> : vector<16xf32>
    %47 = vector.multi_reduction <add>, %46, %cst_21 [1] : vector<16x128xf32> to vector<16xf32>
    %48 = vector.shape_cast %47 : vector<16xf32> to vector<16x1xf32>
    %cst_22 = arith.constant 3.125000e-02 : f32
    %49 = vector.broadcast %cst_22 : f32 to vector<16x1xf32>
    %50 = arith.mulf %48, %49 : vector<16x1xf32>
    %51 = arith.mulf %45, %45 : vector<16x1xf32>
    %52 = arith.subf %50, %51 : vector<16x1xf32>
    %cst_23 = arith.constant 0.000000e+00 : f32
    %53 = vector.broadcast %cst_23 : f32 to vector<16x1xf32>
    %54 = arith.maximumf %52, %53 : vector<16x1xf32>
    %55 = vector.broadcast %45 : vector<16x1xf32> to vector<16x128xf32>
    %56 = arith.subf %41, %55 : vector<16x128xf32>
    %cst_24 = arith.constant 9.99999974E-6 : f32
    %57 = vector.broadcast %cst_24 : f32 to vector<16x1xf32>
    %58 = arith.addf %54, %57 : vector<16x1xf32>
    %59 = math.rsqrt %58 : vector<16x1xf32>
    %60 = vector.broadcast %59 : vector<16x1xf32> to vector<16x128xf32>
    %61 = arith.mulf %56, %60 : vector<16x128xf32>
    %c0_25 = arith.constant 0 : index
    %c0_26 = arith.constant 0 : index
    %62 = vector.load %arg7[%c0_25, %c0_26] : memref<1x128xf32, #tpu.memory_space<vmem>>, vector<1x128xf32>
    %63 = vector.broadcast %62 : vector<1x128xf32> to vector<16x128xf32>
    %64 = arith.mulf %61, %63 : vector<16x128xf32>
    %c0_27 = arith.constant 0 : index
    %c0_28 = arith.constant 0 : index
    %65 = vector.load %arg8[%c0_27, %c0_28] : memref<1x128xf32, #tpu.memory_space<vmem>>, vector<1x128xf32>
    %66 = vector.broadcast %65 : vector<1x128xf32> to vector<16x128xf32>
    %67 = arith.addf %64, %66 : vector<16x128xf32>
    %68 = arith.truncf %67 : vector<16x128xf32> to vector<16x128xbf16>
    %c0_29 = arith.constant 0 : index
    %c0_30 = arith.constant 0 : index
    %69 = vector.load %arg9[%c0_29, %c0_30] : memref<128x128xbf16, #tpu.memory_space<vmem>>, vector<128x128xbf16>
    %cst_31 = arith.constant dense<0.000000e+00> : vector<16x128xf32>
    %70 = tpu.matmul %68, %69, %cst_31 {dimension_numbers = #tpu.dot_dimension_numbers<[1], [0], [0], [1], [0, 0, 1, 1], [], []>} : vector<16x128xbf16>, vector<128x128xbf16>, vector<16x128xf32> -> vector<16x128xf32>
    %c0_32 = arith.constant 0 : index
    %c0_33 = arith.constant 0 : index
    %71 = vector.load %arg10[%c0_32, %c0_33] : memref<1x128xf32, #tpu.memory_space<vmem>>, vector<1x128xf32>
    %72 = vector.broadcast %71 : vector<1x128xf32> to vector<16x128xf32>
    %73 = arith.addf %70, %72 : vector<16x128xf32>
    %cst_34 = arith.constant 0.000000e+00 : f32
    %74 = vector.broadcast %cst_34 : f32 to vector<16x128xf32>
    %75 = arith.maximumf %73, %74 : vector<16x128xf32>
    %76 = arith.truncf %75 : vector<16x128xf32> to vector<16x128xbf16>
    %c0_35 = arith.constant 0 : index
    %c0_36 = arith.constant 0 : index
    %77 = vector.load %arg11[%c0_35, %c0_36] : memref<128x128xbf16, #tpu.memory_space<vmem>>, vector<128x128xbf16>
    %cst_37 = arith.constant dense<0.000000e+00> : vector<16x128xf32>
    %78 = tpu.matmul %76, %77, %cst_37 {dimension_numbers = #tpu.dot_dimension_numbers<[1], [0], [0], [1], [0, 0, 1, 1], [], []>} : vector<16x128xbf16>, vector<128x128xbf16>, vector<16x128xf32> -> vector<16x128xf32>
    %c0_38 = arith.constant 0 : index
    %c0_39 = arith.constant 0 : index
    %79 = vector.load %arg12[%c0_38, %c0_39] : memref<1x128xf32, #tpu.memory_space<vmem>>, vector<1x128xf32>
    %80 = vector.broadcast %79 : vector<1x128xf32> to vector<16x128xf32>
    %81 = arith.addf %78, %80 : vector<16x128xf32>
    %82 = arith.addf %67, %81 : vector<16x128xf32>
    %cst_40 = arith.constant dense<0.000000e+00> : vector<16xf32>
    %83 = vector.multi_reduction <add>, %82, %cst_40 [1] : vector<16x128xf32> to vector<16xf32>
    %84 = vector.shape_cast %83 : vector<16xf32> to vector<16x1xf32>
    %cst_41 = arith.constant 3.125000e-02 : f32
    %85 = vector.broadcast %cst_41 : f32 to vector<16x1xf32>
    %86 = arith.mulf %84, %85 : vector<16x1xf32>
    %87 = arith.mulf %82, %82 : vector<16x128xf32>
    %cst_42 = arith.constant dense<0.000000e+00> : vector<16xf32>
    %88 = vector.multi_reduction <add>, %87, %cst_42 [1] : vector<16x128xf32> to vector<16xf32>
    %89 = vector.shape_cast %88 : vector<16xf32> to vector<16x1xf32>
    %cst_43 = arith.constant 3.125000e-02 : f32
    %90 = vector.broadcast %cst_43 : f32 to vector<16x1xf32>
    %91 = arith.mulf %89, %90 : vector<16x1xf32>
    %92 = arith.mulf %86, %86 : vector<16x1xf32>
    %93 = arith.subf %91, %92 : vector<16x1xf32>
    %cst_44 = arith.constant 0.000000e+00 : f32
    %94 = vector.broadcast %cst_44 : f32 to vector<16x1xf32>
    %95 = arith.maximumf %93, %94 : vector<16x1xf32>
    %96 = vector.broadcast %86 : vector<16x1xf32> to vector<16x128xf32>
    %97 = arith.subf %82, %96 : vector<16x128xf32>
    %cst_45 = arith.constant 9.99999974E-6 : f32
    %98 = vector.broadcast %cst_45 : f32 to vector<16x1xf32>
    %99 = arith.addf %95, %98 : vector<16x1xf32>
    %100 = math.rsqrt %99 : vector<16x1xf32>
    %101 = vector.broadcast %100 : vector<16x1xf32> to vector<16x128xf32>
    %102 = arith.mulf %97, %101 : vector<16x128xf32>
    %c0_46 = arith.constant 0 : index
    %c0_47 = arith.constant 0 : index
    %103 = vector.load %arg13[%c0_46, %c0_47] : memref<1x128xf32, #tpu.memory_space<vmem>>, vector<1x128xf32>
    %104 = vector.broadcast %103 : vector<1x128xf32> to vector<16x128xf32>
    %105 = arith.mulf %102, %104 : vector<16x128xf32>
    %c0_48 = arith.constant 0 : index
    %c0_49 = arith.constant 0 : index
    %106 = vector.load %arg14[%c0_48, %c0_49] : memref<1x128xf32, #tpu.memory_space<vmem>>, vector<1x128xf32>
    %107 = vector.broadcast %106 : vector<1x128xf32> to vector<16x128xf32>
    %108 = arith.addf %105, %107 : vector<16x128xf32>
    %109 = vector.shape_cast %108 : vector<16x128xf32> to vector<2x8x128xf32>
    %110 = tpu.transpose %109, [1, 0, 2] : vector<2x8x128xf32> -> vector<8x2x128xf32>
    %c0_50 = arith.constant 0 : index
    %c0_51 = arith.constant 0 : index
    %c0_52 = arith.constant 0 : index
    %111 = vector.load %arg15[%c0_50, %c0_51, %c0_52] : memref<8x2x128xf32, #tpu.memory_space<vmem>>, vector<8x2x128xf32>
    tpu.vector_store %arg15[%c0_50, %c0_51, %c0_52], %110 {strides = array<i32>} : memref<8x2x128xf32, #tpu.memory_space<vmem>>, vector<8x2x128xf32>,
    return
  }
  func.func @transform_0(%arg0: i32) -> (i32, i32, i32) {
    %c0_i32 = arith.constant 0 : i32
    %c0_i32_0 = arith.constant 0 : i32
    %c0_i32_1 = arith.constant 0 : i32
    return %arg0, %c0_i32, %c0_i32_0 : i32, i32, i32
  }
  func.func @transform_1(%arg0: i32) -> (i32, i32, i32) {
    %c0_i32 = arith.constant 0 : i32
    %c0_i32_0 = arith.constant 0 : i32
    %c0_i32_1 = arith.constant 0 : i32
    return %arg0, %c0_i32, %c0_i32_0 : i32, i32, i32
  }
  func.func @transform_2(%arg0: i32) -> (i32, i32) {
    %c0_i32 = arith.constant 0 : i32
    %c0_i32_0 = arith.constant 0 : i32
    %c0_i32_1 = arith.constant 0 : i32
    return %c0_i32, %c0_i32_0 : i32, i32
  }
  func.func @transform_3(%arg0: i32) -> (i32, i32) {
    %c0_i32 = arith.constant 0 : i32
    %c0_i32_0 = arith.constant 0 : i32
    %c0_i32_1 = arith.constant 0 : i32
    return %c0_i32, %c0_i32_0 : i32, i32
  }
  func.func @transform_4(%arg0: i32) -> (i32, i32) {
    %c0_i32 = arith.constant 0 : i32
    %c0_i32_0 = arith.constant 0 : i32
    %c0_i32_1 = arith.constant 0 : i32
    return %c0_i32, %c0_i32_0 : i32, i32
  }
  func.func @transform_5(%arg0: i32) -> (i32, i32) {
    %c0_i32 = arith.constant 0 : i32
    %c0_i32_0 = arith.constant 0 : i32
    %c0_i32_1 = arith.constant 0 : i32
    return %c0_i32, %c0_i32_0 : i32, i32
  }
  func.func @transform_6(%arg0: i32) -> (i32, i32) {
    %c0_i32 = arith.constant 0 : i32
    %c0_i32_0 = arith.constant 0 : i32
    %c0_i32_1 = arith.constant 0 : i32
    return %c0_i32, %c0_i32_0 : i32, i32
  }
  func.func @transform_7(%arg0: i32) -> (i32, i32) {
    %c0_i32 = arith.constant 0 : i32
    %c0_i32_0 = arith.constant 0 : i32
    %c0_i32_1 = arith.constant 0 : i32
    return %c0_i32, %c0_i32_0 : i32, i32
  }
  func.func @transform_8(%arg0: i32) -> (i32, i32) {
    %c0_i32 = arith.constant 0 : i32
    %c0_i32_0 = arith.constant 0 : i32
    %c0_i32_1 = arith.constant 0 : i32
    return %c0_i32, %c0_i32_0 : i32, i32
  }
  func.func @transform_9(%arg0: i32) -> (i32, i32) {
    %c0_i32 = arith.constant 0 : i32
    %c0_i32_0 = arith.constant 0 : i32
    %c0_i32_1 = arith.constant 0 : i32
    return %c0_i32, %c0_i32_0 : i32, i32
  }
  func.func @transform_10(%arg0: i32) -> (i32, i32) {
    %c0_i32 = arith.constant 0 : i32
    %c0_i32_0 = arith.constant 0 : i32
    %c0_i32_1 = arith.constant 0 : i32
    return %c0_i32, %c0_i32_0 : i32, i32
  }
  func.func @transform_11(%arg0: i32) -> (i32, i32) {
    %c0_i32 = arith.constant 0 : i32
    %c0_i32_0 = arith.constant 0 : i32
    %c0_i32_1 = arith.constant 0 : i32
    return %c0_i32, %c0_i32_0 : i32, i32
  }
  func.func @transform_12(%arg0: i32) -> (i32, i32) {
    %c0_i32 = arith.constant 0 : i32
    %c0_i32_0 = arith.constant 0 : i32
    %c0_i32_1 = arith.constant 0 : i32
    return %c0_i32, %c0_i32_0 : i32, i32
  }
  func.func @transform_13(%arg0: i32) -> (i32, i32) {
    %c0_i32 = arith.constant 0 : i32
    %c0_i32_0 = arith.constant 0 : i32
    %c0_i32_1 = arith.constant 0 : i32
    return %c0_i32, %c0_i32_0 : i32, i32
  }
  func.func @transform_14(%arg0: i32) -> (i32, i32, i32) {
    %c0_i32 = arith.constant 0 : i32
    %c0_i32_0 = arith.constant 0 : i32
    %c0_i32_1 = arith.constant 0 : i32
    return %c0_i32, %arg0, %c0_i32_0 : i32, i32, i32
  }
}

module attributes {stable_mosaic.version = 11 : i64} {
  func.func @_encoder_kernel(%arg0: i32, %arg1: memref<2x8x128xf32, #tpu.memory_space<vmem>>, %arg2: memref<2x1x128xf32, #tpu.memory_space<vmem>>, %arg3: memref<128x384xbf16, #tpu.memory_space<vmem>>, %arg4: memref<1x384xf32, #tpu.memory_space<vmem>>, %arg5: memref<128x128xbf16, #tpu.memory_space<vmem>>, %arg6: memref<1x128xf32, #tpu.memory_space<vmem>>, %arg7: memref<1x128xf32, #tpu.memory_space<vmem>>, %arg8: memref<1x128xf32, #tpu.memory_space<vmem>>, %arg9: memref<128x128xbf16, #tpu.memory_space<vmem>>, %arg10: memref<1x128xf32, #tpu.memory_space<vmem>>, %arg11: memref<128x128xbf16, #tpu.memory_space<vmem>>, %arg12: memref<1x128xf32, #tpu.memory_space<vmem>>, %arg13: memref<1x128xf32, #tpu.memory_space<vmem>>, %arg14: memref<1x128xf32, #tpu.memory_space<vmem>>, %arg15: memref<2x8x128xf32, #tpu.memory_space<vmem>>) attributes {dimension_semantics = [#tpu.dimension_semantics<parallel>], iteration_bounds = array<i64: 1>, scalar_prefetch = 0 : i64, scratch_operands = 0 : i64, tpu.core_type = #tpu.core_type<tc>, window_params = [{transform_indices = @transform_0, window_bounds = array<i64: 2, 8, 128>}, {transform_indices = @transform_1, window_bounds = array<i64: 2, 1, 128>}, {pipeline_mode = #tpu.pipeline_mode<synchronous>, transform_indices = @transform_2, window_bounds = array<i64: 128, 384>}, {pipeline_mode = #tpu.pipeline_mode<synchronous>, transform_indices = @transform_3, window_bounds = array<i64: 1, 384>}, {pipeline_mode = #tpu.pipeline_mode<synchronous>, transform_indices = @transform_4, window_bounds = array<i64: 128, 128>}, {pipeline_mode = #tpu.pipeline_mode<synchronous>, transform_indices = @transform_5, window_bounds = array<i64: 1, 128>}, {pipeline_mode = #tpu.pipeline_mode<synchronous>, transform_indices = @transform_6, window_bounds = array<i64: 1, 128>}, {pipeline_mode = #tpu.pipeline_mode<synchronous>, transform_indices = @transform_7, window_bounds = array<i64: 1, 128>}, {pipeline_mode = #tpu.pipeline_mode<synchronous>, transform_indices = @transform_8, window_bounds = array<i64: 128, 128>}, {pipeline_mode = #tpu.pipeline_mode<synchronous>, transform_indices = @transform_9, window_bounds = array<i64: 1, 128>}, {pipeline_mode = #tpu.pipeline_mode<synchronous>, transform_indices = @transform_10, window_bounds = array<i64: 128, 128>}, {pipeline_mode = #tpu.pipeline_mode<synchronous>, transform_indices = @transform_11, window_bounds = array<i64: 1, 128>}, {pipeline_mode = #tpu.pipeline_mode<synchronous>, transform_indices = @transform_12, window_bounds = array<i64: 1, 128>}, {pipeline_mode = #tpu.pipeline_mode<synchronous>, transform_indices = @transform_13, window_bounds = array<i64: 1, 128>}, {transform_indices = @transform_14, window_bounds = array<i64: 2, 8, 128>}]} {
    %c0 = arith.constant 0 : index
    %c0_0 = arith.constant 0 : index
    %c0_1 = arith.constant 0 : index
    %0 = vector.load %arg1[%c0, %c0_0, %c0_1] : memref<2x8x128xf32, #tpu.memory_space<vmem>>, vector<2x8x128xf32>
    %cst = arith.constant 5.65685415 : f32
    %1 = vector.broadcast %cst : f32 to vector<2x8x128xf32>
    %2 = arith.mulf %0, %1 : vector<2x8x128xf32>
    %c0_2 = arith.constant 0 : index
    %c0_3 = arith.constant 0 : index
    %c0_4 = arith.constant 0 : index
    %3 = vector.load %arg2[%c0_2, %c0_3, %c0_4] : memref<2x1x128xf32, #tpu.memory_space<vmem>>, vector<2x1x128xf32>
    %4 = vector.broadcast %3 : vector<2x1x128xf32> to vector<2x8x128xf32>
    %5 = arith.addf %2, %4 : vector<2x8x128xf32>
    %6 = vector.shape_cast %5 : vector<2x8x128xf32> to vector<16x128xf32>
    %7 = arith.truncf %6 : vector<16x128xf32> to vector<16x128xbf16>
    %c0_5 = arith.constant 0 : index
    %c0_6 = arith.constant 0 : index
    %8 = vector.load %arg3[%c0_5, %c0_6] : memref<128x384xbf16, #tpu.memory_space<vmem>>, vector<128x384xbf16>
    %cst_7 = arith.constant dense<0.000000e+00> : vector<16x384xf32>
    %9 = tpu.matmul %7, %8, %cst_7 {dimension_numbers = #tpu.dot_dimension_numbers<[1], [0], [0], [1], [0, 0, 1, 1], [], []>} : vector<16x128xbf16>, vector<128x384xbf16>, vector<16x384xf32> -> vector<16x384xf32>
    %c0_8 = arith.constant 0 : index
    %c0_9 = arith.constant 0 : index
    %10 = vector.load %arg4[%c0_8, %c0_9] : memref<1x384xf32, #tpu.memory_space<vmem>>, vector<1x384xf32>
    %11 = vector.broadcast %10 : vector<1x384xf32> to vector<16x384xf32>
    %12 = arith.addf %9, %11 : vector<16x384xf32>
    %13 = vector.extract_strided_slice %12 {offsets = [0, 0], sizes = [16, 128], strides = [1, 1]} : vector<16x384xf32> to vector<16x128xf32>
    %14 = vector.shape_cast %13 : vector<16x128xf32> to vector<2x8x128xf32>
    %15 = arith.truncf %14 : vector<2x8x128xf32> to vector<2x8x128xbf16>
    %16 = vector.extract_strided_slice %12 {offsets = [0, 128], sizes = [16, 128], strides = [1, 1]} : vector<16x384xf32> to vector<16x128xf32>
    %17 = vector.shape_cast %16 : vector<16x128xf32> to vector<2x8x128xf32>
    %18 = arith.truncf %17 : vector<2x8x128xf32> to vector<2x8x128xbf16>
    %19 = vector.extract_strided_slice %12 {offsets = [0, 256], sizes = [16, 128], strides = [1, 1]} : vector<16x384xf32> to vector<16x128xf32>
    %20 = vector.shape_cast %19 : vector<16x128xf32> to vector<2x8x128xf32>
    %21 = arith.truncf %20 : vector<2x8x128xf32> to vector<2x8x128xbf16>
    "tpu.trace_start"() <{level = 10 : i32, message = "bqd,bkd->bqk"}> : () -> ()
    %cst_10 = arith.constant dense<0.000000e+00> : vector<2x8x8xf32>
    %22 = tpu.matmul %15, %18, %cst_10 {dimension_numbers = #tpu.dot_dimension_numbers<[2], [2], [1], [1], [0, 0, 0, 1, 1, 1], [0], [0]>} : vector<2x8x128xbf16>, vector<2x8x128xbf16>, vector<2x8x8xf32> -> vector<2x8x8xf32>
    "tpu.trace_stop"() : () -> ()
    %cst_11 = arith.constant dense<0xFF800000> : vector<2x8xf32>
    %23 = vector.multi_reduction <maximumf>, %22, %cst_11 [2] : vector<2x8x8xf32> to vector<2x8xf32>
    %24 = vector.shape_cast %23 : vector<2x8xf32> to vector<2x8x1xf32>
    %25 = vector.broadcast %24 : vector<2x8x1xf32> to vector<2x8x8xf32>
    %26 = arith.subf %22, %25 : vector<2x8x8xf32>
    %27 = math.exp %26 : vector<2x8x8xf32>
    %cst_12 = arith.constant dense<0.000000e+00> : vector<2x8xf32>
    %28 = vector.multi_reduction <add>, %27, %cst_12 [2] : vector<2x8x8xf32> to vector<2x8xf32>
    %29 = vector.shape_cast %28 : vector<2x8xf32> to vector<2x8x1xf32>
    %30 = vector.broadcast %29 : vector<2x8x1xf32> to vector<2x8x8xf32>
    %31 = arith.divf %27, %30 : vector<2x8x8xf32>
    %32 = arith.truncf %31 : vector<2x8x8xf32> to vector<2x8x8xbf16>
    "tpu.trace_start"() <{level = 10 : i32, message = "bqk,bkd->bqd"}> : () -> ()
    %cst_13 = arith.constant dense<0.000000e+00> : vector<2x8x128xf32>
    %33 = tpu.matmul %32, %21, %cst_13 {dimension_numbers = #tpu.dot_dimension_numbers<[2], [1], [1], [2], [0, 0, 0, 1, 1, 2], [0], [0]>} : vector<2x8x8xbf16>, vector<2x8x128xbf16>, vector<2x8x128xf32> -> vector<2x8x128xf32>
    "tpu.trace_stop"() : () -> ()
    %34 = vector.shape_cast %33 : vector<2x8x128xf32> to vector<16x128xf32>
    %35 = arith.truncf %34 : vector<16x128xf32> to vector<16x128xbf16>
    %c0_14 = arith.constant 0 : index
    %c0_15 = arith.constant 0 : index
    %36 = vector.load %arg5[%c0_14, %c0_15] : memref<128x128xbf16, #tpu.memory_space<vmem>>, vector<128x128xbf16>
    %cst_16 = arith.constant dense<0.000000e+00> : vector<16x128xf32>
    %37 = tpu.matmul %35, %36, %cst_16 {dimension_numbers = #tpu.dot_dimension_numbers<[1], [0], [0], [1], [0, 0, 1, 1], [], []>} : vector<16x128xbf16>, vector<128x128xbf16>, vector<16x128xf32> -> vector<16x128xf32>
    %c0_17 = arith.constant 0 : index
    %c0_18 = arith.constant 0 : index
    %38 = vector.load %arg6[%c0_17, %c0_18] : memref<1x128xf32, #tpu.memory_space<vmem>>, vector<1x128xf32>
    %39 = vector.broadcast %38 : vector<1x128xf32> to vector<16x128xf32>
    %40 = arith.addf %37, %39 : vector<16x128xf32>
    %41 = arith.addf %6, %40 : vector<16x128xf32>
    %cst_19 = arith.constant dense<0.000000e+00> : vector<16xf32>
    %42 = vector.multi_reduction <add>, %41, %cst_19 [1] : vector<16x128xf32> to vector<16xf32>
    %43 = vector.shape_cast %42 : vector<16xf32> to vector<16x1xf32>
    %cst_20 = arith.constant 3.125000e-02 : f32
    %44 = vector.broadcast %cst_20 : f32 to vector<16x1xf32>
    %45 = arith.mulf %43, %44 : vector<16x1xf32>
    %46 = arith.mulf %41, %41 : vector<16x128xf32>
    %cst_21 = arith.constant dense<0.000000e+00> : vector<16xf32>
    %47 = vector.multi_reduction <add>, %46, %cst_21 [1] : vector<16x128xf32> to vector<16xf32>
    %48 = vector.shape_cast %47 : vector<16xf32> to vector<16x1xf32>
    %cst_22 = arith.constant 3.125000e-02 : f32
    %49 = vector.broadcast %cst_22 : f32 to vector<16x1xf32>
    %50 = arith.mulf %48, %49 : vector<16x1xf32>
    %51 = arith.mulf %45, %45 : vector<16x1xf32>
    %52 = arith.subf %50, %51 : vector<16x1xf32>
    %cst_23 = arith.constant 0.000000e+00 : f32
    %53 = vector.broadcast %cst_23 : f32 to vector<16x1xf32>
    %54 = arith.maximumf %52, %53 : vector<16x1xf32>
    %55 = vector.broadcast %45 : vector<16x1xf32> to vector<16x128xf32>
    %56 = arith.subf %41, %55 : vector<16x128xf32>
    %cst_24 = arith.constant 9.99999974E-6 : f32
    %57 = vector.broadcast %cst_24 : f32 to vector<16x1xf32>
    %58 = arith.addf %54, %57 : vector<16x1xf32>
    %59 = math.rsqrt %58 : vector<16x1xf32>
    %60 = vector.broadcast %59 : vector<16x1xf32> to vector<16x128xf32>
    %61 = arith.mulf %56, %60 : vector<16x128xf32>
    %c0_25 = arith.constant 0 : index
    %c0_26 = arith.constant 0 : index
    %62 = vector.load %arg7[%c0_25, %c0_26] : memref<1x128xf32, #tpu.memory_space<vmem>>, vector<1x128xf32>
    %63 = vector.broadcast %62 : vector<1x128xf32> to vector<16x128xf32>
    %64 = arith.mulf %61, %63 : vector<16x128xf32>
    %c0_27 = arith.constant 0 : index
    %c0_28 = arith.constant 0 : index
    %65 = vector.load %arg8[%c0_27, %c0_28] : memref<1x128xf32, #tpu.memory_space<vmem>>, vector<1x128xf32>
    %66 = vector.broadcast %65 : vector<1x128xf32> to vector<16x128xf32>
    %67 = arith.addf %64, %66 : vector<16x128xf32>
    %68 = arith.truncf %67 : vector<16x128xf32> to vector<16x128xbf16>
    %c0_29 = arith.constant 0 : index
    %c0_30 = arith.constant 0 : index
    %69 = vector.load %arg9[%c0_29, %c0_30] : memref<128x128xbf16, #tpu.memory_space<vmem>>, vector<128x128xbf16>
    %cst_31 = arith.constant dense<0.000000e+00> : vector<16x128xf32>
    %70 = tpu.matmul %68, %69, %cst_31 {dimension_numbers = #tpu.dot_dimension_numbers<[1], [0], [0], [1], [0, 0, 1, 1], [], []>} : vector<16x128xbf16>, vector<128x128xbf16>, vector<16x128xf32> -> vector<16x128xf32>
    %c0_32 = arith.constant 0 : index
    %c0_33 = arith.constant 0 : index
    %71 = vector.load %arg10[%c0_32, %c0_33] : memref<1x128xf32, #tpu.memory_space<vmem>>, vector<1x128xf32>
    %72 = vector.broadcast %71 : vector<1x128xf32> to vector<16x128xf32>
    %73 = arith.addf %70, %72 : vector<16x128xf32>
    %cst_34 = arith.constant 0.000000e+00 : f32
    %74 = vector.broadcast %cst_34 : f32 to vector<16x128xf32>
    %75 = arith.maximumf %73, %74 : vector<16x128xf32>
    %76 = arith.truncf %75 : vector<16x128xf32> to vector<16x128xbf16>
    %c0_35 = arith.constant 0 : index
    %c0_36 = arith.constant 0 : index
    %77 = vector.load %arg11[%c0_35, %c0_36] : memref<128x128xbf16, #tpu.memory_space<vmem>>, vector<128x128xbf16>
    %cst_37 = arith.constant dense<0.000000e+00> : vector<16x128xf32>
    %78 = tpu.matmul %76, %77, %cst_37 {dimension_numbers = #tpu.dot_dimension_numbers<[1], [0], [0], [1], [0, 0, 1, 1], [], []>} : vector<16x128xbf16>, vector<128x128xbf16>, vector<16x128xf32> -> vector<16x128xf32>
    %c0_38 = arith.constant 0 : index
    %c0_39 = arith.constant 0 : index
    %79 = vector.load %arg12[%c0_38, %c0_39] : memref<1x128xf32, #tpu.memory_space<vmem>>, vector<1x128xf32>
    %80 = vector.broadcast %79 : vector<1x128xf32> to vector<16x128xf32>
    %81 = arith.addf %78, %80 : vector<16x128xf32>
    %82 = arith.addf %67, %81 : vector<16x128xf32>
    %cst_40 = arith.constant dense<0.000000e+00> : vector<16xf32>
    %83 = vector.multi_reduction <add>, %82, %cst_40 [1] : vector<16x128xf32> to vector<16xf32>
    %84 = vector.shape_cast %83 : vector<16xf32> to vector<16x1xf32>
    %cst_41 = arith.constant 3.125000e-02 : f32
    %85 = vector.broadcast %cst_41 : f32 to vector<16x1xf32>
    %86 = arith.mulf %84, %85 : vector<16x1xf32>
    %87 = arith.mulf %82, %82 : vector<16x128xf32>
    %cst_42 = arith.constant dense<0.000000e+00> : vector<16xf32>
    %88 = vector.multi_reduction <add>, %87, %cst_42 [1] : vector<16x128xf32> to vector<16xf32>
    %89 = vector.shape_cast %88 : vector<16xf32> to vector<16x1xf32>
    %cst_43 = arith.constant 3.125000e-02 : f32
    %90 = vector.broadcast %cst_43 : f32 to vector<16x1xf32>
    %91 = arith.mulf %89, %90 : vector<16x1xf32>
    %92 = arith.mulf %86, %86 : vector<16x1xf32>
    %93 = arith.subf %91, %92 : vector<16x1xf32>
    %cst_44 = arith.constant 0.000000e+00 : f32
    %94 = vector.broadcast %cst_44 : f32 to vector<16x1xf32>
    %95 = arith.maximumf %93, %94 : vector<16x1xf32>
    %96 = vector.broadcast %86 : vector<16x1xf32> to vector<16x128xf32>
    %97 = arith.subf %82, %96 : vector<16x128xf32>
    %cst_45 = arith.constant 9.99999974E-6 : f32
    %98 = vector.broadcast %cst_45 : f32 to vector<16x1xf32>
    %99 = arith.addf %95, %98 : vector<16x1xf32>
    %100 = math.rsqrt %99 : vector<16x1xf32>
    %101 = vector.broadcast %100 : vector<16x1xf32> to vector<16x128xf32>
    %102 = arith.mulf %97, %101 : vector<16x128xf32>
    %c0_46 = arith.constant 0 : index
    %c0_47 = arith.constant 0 : index
    %103 = vector.load %arg13[%c0_46, %c0_47] : memref<1x128xf32, #tpu.memory_space<vmem>>, vector<1x128xf32>
    %104 = vector.broadcast %103 : vector<1x128xf32> to vector<16x128xf32>
    %105 = arith.mulf %102, %104 : vector<16x128xf32>
    %c0_48 = arith.constant 0 : index
    %c0_49 = arith.constant 0 : index
    %106 = vector.load %arg14[%c0_48, %c0_49] : memref<1x128xf32, #tpu.memory_space<vmem>>, vector<1x128xf32>
    %107 = vector.broadcast %106 : vector<1x128xf32> to vector<16x128xf32>
    %108 = arith.addf %105, %107 : vector<16x128xf32>
    %109 = vector.shape_cast %108 : vector<16x128xf32> to vector<2x8x128xf32>
    %c0_50 = arith.constant 0 : index
    %c0_51 = arith.constant 0 : index
    %c0_52 = arith.constant 0 : index
    %110 = vector.load %arg15[%c0_50, %c0_51, %c0_52] : memref<2x8x128xf32, #tpu.memory_space<vmem>>, vector<2x8x128xf32>
    tpu.vector_store %arg15[%c0_50, %c0_51, %c0_52], %109 {strides = array<i32>} : memref<2x8x128xf32, #tpu.memory_space<vmem>>, vector<2x8x128xf32>,
    return
  }
  func.func @transform_0(%arg0: i32) -> (i32, i32, i32) {
    %c0_i32 = arith.constant 0 : i32
    %c0_i32_0 = arith.constant 0 : i32
    %c0_i32_1 = arith.constant 0 : i32
    return %arg0, %c0_i32, %c0_i32_0 : i32, i32, i32
  }
  func.func @transform_1(%arg0: i32) -> (i32, i32, i32) {
    %c0_i32 = arith.constant 0 : i32
    %c0_i32_0 = arith.constant 0 : i32
    %c0_i32_1 = arith.constant 0 : i32
    return %arg0, %c0_i32, %c0_i32_0 : i32, i32, i32
  }
  func.func @transform_2(%arg0: i32) -> (i32, i32) {
    %c0_i32 = arith.constant 0 : i32
    %c0_i32_0 = arith.constant 0 : i32
    %c0_i32_1 = arith.constant 0 : i32
    return %c0_i32, %c0_i32_0 : i32, i32
  }
  func.func @transform_3(%arg0: i32) -> (i32, i32) {
    %c0_i32 = arith.constant 0 : i32
    %c0_i32_0 = arith.constant 0 : i32
    %c0_i32_1 = arith.constant 0 : i32
    return %c0_i32, %c0_i32_0 : i32, i32
  }
  func.func @transform_4(%arg0: i32) -> (i32, i32) {
    %c0_i32 = arith.constant 0 : i32
    %c0_i32_0 = arith.constant 0 : i32
    %c0_i32_1 = arith.constant 0 : i32
    return %c0_i32, %c0_i32_0 : i32, i32
  }
  func.func @transform_5(%arg0: i32) -> (i32, i32) {
    %c0_i32 = arith.constant 0 : i32
    %c0_i32_0 = arith.constant 0 : i32
    %c0_i32_1 = arith.constant 0 : i32
    return %c0_i32, %c0_i32_0 : i32, i32
  }
  func.func @transform_6(%arg0: i32) -> (i32, i32) {
    %c0_i32 = arith.constant 0 : i32
    %c0_i32_0 = arith.constant 0 : i32
    %c0_i32_1 = arith.constant 0 : i32
    return %c0_i32, %c0_i32_0 : i32, i32
  }
  func.func @transform_7(%arg0: i32) -> (i32, i32) {
    %c0_i32 = arith.constant 0 : i32
    %c0_i32_0 = arith.constant 0 : i32
    %c0_i32_1 = arith.constant 0 : i32
    return %c0_i32, %c0_i32_0 : i32, i32
  }
  func.func @transform_8(%arg0: i32) -> (i32, i32) {
    %c0_i32 = arith.constant 0 : i32
    %c0_i32_0 = arith.constant 0 : i32
    %c0_i32_1 = arith.constant 0 : i32
    return %c0_i32, %c0_i32_0 : i32, i32
  }
  func.func @transform_9(%arg0: i32) -> (i32, i32) {
    %c0_i32 = arith.constant 0 : i32
    %c0_i32_0 = arith.constant 0 : i32
    %c0_i32_1 = arith.constant 0 : i32
    return %c0_i32, %c0_i32_0 : i32, i32
  }
  func.func @transform_10(%arg0: i32) -> (i32, i32) {
    %c0_i32 = arith.constant 0 : i32
    %c0_i32_0 = arith.constant 0 : i32
    %c0_i32_1 = arith.constant 0 : i32
    return %c0_i32, %c0_i32_0 : i32, i32
  }
  func.func @transform_11(%arg0: i32) -> (i32, i32) {
    %c0_i32 = arith.constant 0 : i32
    %c0_i32_0 = arith.constant 0 : i32
    %c0_i32_1 = arith.constant 0 : i32
    return %c0_i32, %c0_i32_0 : i32, i32
  }
  func.func @transform_12(%arg0: i32) -> (i32, i32) {
    %c0_i32 = arith.constant 0 : i32
    %c0_i32_0 = arith.constant 0 : i32
    %c0_i32_1 = arith.constant 0 : i32
    return %c0_i32, %c0_i32_0 : i32, i32
  }
  func.func @transform_13(%arg0: i32) -> (i32, i32) {
    %c0_i32 = arith.constant 0 : i32
    %c0_i32_0 = arith.constant 0 : i32
    %c0_i32_1 = arith.constant 0 : i32
    return %c0_i32, %c0_i32_0 : i32, i32
  }
  func.func @transform_14(%arg0: i32) -> (i32, i32, i32) {
    %c0_i32 = arith.constant 0 : i32
    %c0_i32_0 = arith.constant 0 : i32
    %c0_i32_1 = arith.constant 0 : i32
    return %arg0, %c0_i32, %c0_i32_0 : i32, i32, i32
  }
}

</mosaic_0001>

<llo_original>
// kernel: tpu_custom_call.1
$region0: #{tpu_custom_call.1}
  #allocation0 [shape = 'u32[]', space=smem, size = 0x4, offset = 0x4, fixed_abs, tag = 'smem constant byte address 0x4 - core index']
  #allocation1 [shape = 'u32[144,128]{1,0:T(1,128)}', space=vmem, size = 0x12000, scoped, tag = 'internal scratch']
  %s0 = inlined_call_operand.hbm [shape: f32[2,8,128], index: 0, kind: input, shape index: {}]
  %s1 = inlined_call_operand.vmem [shape: f32[2,1,128], index: 1, kind: input, shape index: {}]
  %s2 = inlined_call_operand.hbm [shape: bf16[128,384], index: 2, kind: input, shape index: {}]
  %s3 = inlined_call_operand.vmem [shape: f32[1,384], index: 3, kind: input, shape index: {}]
  %s4 = inlined_call_operand.hbm [shape: bf16[128,128], index: 4, kind: input, shape index: {}]
  %s5 = inlined_call_operand.vmem [shape: f32[1,128], index: 5, kind: input, shape index: {}]
  %s6 = inlined_call_operand.vmem [shape: f32[1,128], index: 6, kind: input, shape index: {}]
  %s7 = inlined_call_operand.vmem [shape: f32[1,128], index: 7, kind: input, shape index: {}]
  %s8 = inlined_call_operand.hbm [shape: bf16[128,128], index: 8, kind: input, shape index: {}]
  %s9 = inlined_call_operand.vmem [shape: f32[1,128], index: 9, kind: input, shape index: {}]
  %s10 = inlined_call_operand.hbm [shape: bf16[128,128], index: 10, kind: input, shape index: {}]
  %s11 = inlined_call_operand.vmem [shape: f32[1,128], index: 11, kind: input, shape index: {}]
  %s12 = inlined_call_operand.vmem [shape: f32[1,128], index: 12, kind: input, shape index: {}]
  %s13 = inlined_call_operand.vmem [shape: f32[1,128], index: 13, kind: input, shape index: {}]
  %s14 = inlined_call_operand.hbm [shape: f32[8,2,128], index: 14, kind: output, shape index: {}]
  %s15 = sld [smem:[#allocation0]]
  $region86: #{tpu_custom_call.1} parent=0
    _
  %s17 = ssub.s32 1, %s15
  %s18 = scalar_select 0, %s17, %s15
  $region1: #{tpu_custom_call.1} parent=0
    #allocation2 [shape = 'u8[8192]{0}', space=vmem, size = 0x2000, scoped, tag = 'input window, operand 0, single buffered']
    #allocation3 [shape = 's32[1]{0}', space=sflag, size = 0x4, scoped, tag = 'scoped memory for tpu_custom_call.1']
    #allocation4 [shape = 's32[1]{0}', space=sflag, size = 0x4, scoped, tag = 'scoped memory for tpu_custom_call.1']
    #allocation5 [shape = 'u8[98304]{0}', space=vmem, size = 0x18000, scoped, tag = 'input window, operand 2, single buffered']
    #allocation6 [shape = 's32[1]{0}', space=sflag, size = 0x4, scoped, tag = 'scoped memory for tpu_custom_call.1']
    #allocation7 [shape = 'u8[32768]{0}', space=vmem, size = 0x8000, scoped, tag = 'input window, operand 4, single buffered']
    #allocation8 [shape = 'u8[32768]{0}', space=vmem, size = 0x8000, scoped, tag = 'input window, operand 8, single buffered']
    #allocation9 [shape = 's32[1]{0}', space=sflag, size = 0x4, scoped, tag = 'scoped memory for tpu_custom_call.1']
    #allocation10 [shape = 'u8[32768]{0}', space=vmem, size = 0x8000, scoped, tag = 'input window, operand 10, single buffered']
    #allocation11 [shape = 'u8[8192]{0}', space=vmem, size = 0x2000, scoped, tag = 'output window, operand 0, single buffered']
    %19 = vsyncpa [#allocation3], 0
    %20 = vsyncpa [#allocation6], 0
    %21 = vsyncpa [#allocation9], 0
    %22 = vsyncpa [#allocation4], 0
    // Predicated region
    $region2: #{tpu_custom_call.1} parent=1 // pred_check
      _
    $region3: #{tpu_custom_call.1} parent=1 // pred_check_branch
      %24 = sbr.rel (0) target = $region5
    $region4: #{tpu_custom_call.1} parent=1 // pred_region
      %s26 = ssub.s32 256, 256
      %27 = vsyncadd [#allocation3], %s26
      %s28 = sshll.u32 [#allocation2], 4
      %s29 = int_to_ptr.vmem [resolvable:$true] %s28
      %34 = dma.hbm_to_vmem [thread:$0]  %s0, 256, %s29, [#allocation3], 128, 128, 8
    $region5: #{tpu_custom_call.1} parent=1 // pred_fallthru
      _
    // Predicated region
    $region6: #{tpu_custom_call.1} parent=1 // pred_check
      _
    $region7: #{tpu_custom_call.1} parent=1 // pred_check_branch
      %36 = sbr.rel (0) target = $region9
    $region8: #{tpu_custom_call.1} parent=1 // pred_region
      _
    $region9: #{tpu_custom_call.1} parent=1 // pred_fallthru
      _
    // Predicated region
    $region10: #{tpu_custom_call.1} parent=1 // pred_check
      _
    $region11: #{tpu_custom_call.1} parent=1 // pred_check_branch
      %38 = sbr.rel (0) target = $region13
    $region12: #{tpu_custom_call.1} parent=1 // pred_region
      %s40 = ssub.s32 3072, 3072
      %41 = vsyncadd [#allocation6], %s40
      %s42 = sshll.u32 [#allocation5], 4
      %s43 = int_to_ptr.vmem [resolvable:$true] %s42
      %48 = dma.hbm_to_vmem [thread:$0]  %s2, 3072, %s43, [#allocation6], 192, 192, 12
    $region13: #{tpu_custom_call.1} parent=1 // pred_fallthru
      _
    // Predicated region
    $region14: #{tpu_custom_call.1} parent=1 // pred_check
      _
    $region15: #{tpu_custom_call.1} parent=1 // pred_check_branch
      %50 = sbr.rel (0) target = $region17
    $region16: #{tpu_custom_call.1} parent=1 // pred_region
      _
    $region17: #{tpu_custom_call.1} parent=1 // pred_fallthru
      _
    // Predicated region
    $region18: #{tpu_custom_call.1} parent=1 // pred_check
      _
    $region19: #{tpu_custom_call.1} parent=1 // pred_check_branch
      %52 = sbr.rel (0) target = $region21
    $region20: #{tpu_custom_call.1} parent=1 // pred_region
      %s54 = ssub.s32 1024, 1024
      %55 = vsyncadd [#allocation6], %s54
      %s56 = sshll.u32 [#allocation7], 4
      %s57 = int_to_ptr.vmem [resolvable:$true] %s56
      %62 = dma.hbm_to_vmem [thread:$0]  %s4, 1024, %s57, [#allocation6], 64, 64, 4
    $region21: #{tpu_custom_call.1} parent=1 // pred_fallthru
      _
    // Predicated region
    $region22: #{tpu_custom_call.1} parent=1 // pred_check
      _
    $region23: #{tpu_custom_call.1} parent=1 // pred_check_branch
      %64 = sbr.rel (0) target = $region25
    $region24: #{tpu_custom_call.1} parent=1 // pred_region
      _
    $region25: #{tpu_custom_call.1} parent=1 // pred_fallthru
      _
    // Predicated region
    $region26: #{tpu_custom_call.1} parent=1 // pred_check
      _
    $region27: #{tpu_custom_call.1} parent=1 // pred_check_branch
      %66 = sbr.rel (0) target = $region29
    $region28: #{tpu_custom_call.1} parent=1 // pred_region
      _
    $region29: #{tpu_custom_call.1} parent=1 // pred_fallthru
      _
    // Predicated region
    $region30: #{tpu_custom_call.1} parent=1 // pred_check
      _
    $region31: #{tpu_custom_call.1} parent=1 // pred_check_branch
      %68 = sbr.rel (0) target = $region33
    $region32: #{tpu_custom_call.1} parent=1 // pred_region
      _
    $region33: #{tpu_custom_call.1} parent=1 // pred_fallthru
      _
    // Predicated region
    $region34: #{tpu_custom_call.1} parent=1 // pred_check
      _
    $region35: #{tpu_custom_call.1} parent=1 // pred_check_branch
      %70 = sbr.rel (0) target = $region37
    $region36: #{tpu_custom_call.1} parent=1 // pred_region
      %s72 = ssub.s32 1024, 1024
      %73 = vsyncadd [#allocation9], %s72
      %s74 = sshll.u32 [#allocation8], 4
      %s75 = int_to_ptr.vmem [resolvable:$true] %s74
      %80 = dma.hbm_to_vmem [thread:$0]  %s8, 1024, %s75, [#allocation9], 64, 64, 4
    $region37: #{tpu_custom_call.1} parent=1 // pred_fallthru
      _
    // Predicated region
    $region38: #{tpu_custom_call.1} parent=1 // pred_check
      _
    $region39: #{tpu_custom_call.1} parent=1 // pred_check_branch
      %82 = sbr.rel (0) target = $region41
    $region40: #{tpu_custom_call.1} parent=1 // pred_region
      _
    $region41: #{tpu_custom_call.1} parent=1 // pred_fallthru
      _
    // Predicated region
    $region42: #{tpu_custom_call.1} parent=1 // pred_check
      _
    $region43: #{tpu_custom_call.1} parent=1 // pred_check_branch
      %84 = sbr.rel (0) target = $region45
    $region44: #{tpu_custom_call.1} parent=1 // pred_region
      %s86 = ssub.s32 1024, 1024
      %87 = vsyncadd [#allocation9], %s86
      %s88 = sshll.u32 [#allocation10], 4
      %s89 = int_to_ptr.vmem [resolvable:$true] %s88
      %94 = dma.hbm_to_vmem [thread:$0]  %s10, 1024, %s89, [#allocation9], 64, 64, 4
    $region45: #{tpu_custom_call.1} parent=1 // pred_fallthru
      _
    // Predicated region
    $region46: #{tpu_custom_call.1} parent=1 // pred_check
      _
    $region47: #{tpu_custom_call.1} parent=1 // pred_check_branch
      %96 = sbr.rel (0) target = $region49
    $region48: #{tpu_custom_call.1} parent=1 // pred_region
      _
    $region49: #{tpu_custom_call.1} parent=1 // pred_fallthru
      _
    // Predicated region
    $region50: #{tpu_custom_call.1} parent=1 // pred_check
      _
    $region51: #{tpu_custom_call.1} parent=1 // pred_check_branch
      %98 = sbr.rel (0) target = $region53
    $region52: #{tpu_custom_call.1} parent=1 // pred_region
      _
    $region53: #{tpu_custom_call.1} parent=1 // pred_fallthru
      _
    // Predicated region
    $region54: #{tpu_custom_call.1} parent=1 // pred_check
      _
    $region55: #{tpu_custom_call.1} parent=1 // pred_check_branch
      %100 = sbr.rel (0) target = $region57
    $region56: #{tpu_custom_call.1} parent=1 // pred_region
      _
    $region57: #{tpu_custom_call.1} parent=1 // pred_fallthru
      _
    // Predicated region
    $region58: #{tpu_custom_call.1} parent=1 // pred_check
      _
    $region59: #{tpu_custom_call.1} parent=1 // pred_check_branch
      %102 = sbr.rel (0) target = $region61
    $region60: #{tpu_custom_call.1} parent=1 // pred_region
      %103 = dma.done [#allocation3], 256
    $region61: #{tpu_custom_call.1} parent=1 // pred_fallthru
      _
    // Predicated region
    $region62: #{tpu_custom_call.1} parent=1 // pred_check
      _
    $region63: #{tpu_custom_call.1} parent=1 // pred_check_branch
      %105 = sbr.rel (0) target = $region65
    $region64: #{tpu_custom_call.1} parent=1 // pred_region
      %106 = dma.done [#allocation6], 3072
    $region65: #{tpu_custom_call.1} parent=1 // pred_fallthru
      _
    // Predicated region
    $region66: #{tpu_custom_call.1} parent=1 // pred_check
      _
    $region67: #{tpu_custom_call.1} parent=1 // pred_check_branch
      %108 = sbr.rel (0) target = $region69
    $region68: #{tpu_custom_call.1} parent=1 // pred_region
      %109 = dma.done [#allocation6], 1024
    $region69: #{tpu_custom_call.1} parent=1 // pred_fallthru
      _
    // Predicated region
    $region70: #{tpu_custom_call.1} parent=1 // pred_check
      _
    $region71: #{tpu_custom_call.1} parent=1 // pred_check_branch
      %111 = sbr.rel (0) target = $region73
    $region72: #{tpu_custom_call.1} parent=1 // pred_region
      %112 = dma.done [#allocation9], 1024
    $region73: #{tpu_custom_call.1} parent=1 // pred_fallthru
      _
    // Predicated region
    $region74: #{tpu_custom_call.1} parent=1 // pred_check
      _
    $region75: #{tpu_custom_call.1} parent=1 // pred_check_branch
      %114 = sbr.rel (0) target = $region77
    $region76: #{tpu_custom_call.1} parent=1 // pred_region
      %115 = dma.done [#allocation9], 1024
    $region77: #{tpu_custom_call.1} parent=1 // pred_fallthru
      _
    %v117 = vld [vmem:[#allocation2] sm:$0xff]
    %v118 = vld [vmem:[#allocation2 + $0x8] sm:$0xff]
    %v119 = vmul.f32 %v117, 5.656854
    %v120 = vmul.f32 %v118, 5.656854
    %v121 = vld [vmem:[%s1] sm:$0x1]
    %v122 = vld [vmem:[%s1 + $0x1] sm:$0x1]
    %v125 = vlaneseq
    %v126 = vshrl.u32 %v125, 7
    %v127 = vsub.s32 0, %v126
    %v128 = vrot.slane %v121, %v127
    %v129 = vlaneseq
    %v130 = vshrl.u32 %v129, 7
    %v131 = vsub.s32 0, %v130
    %v132 = vrot.slane %v122, %v131
    %v135 = vadd.f32 %v119, %v128
    %v136 = vadd.f32 %v120, %v132
    %v137 = vpack.c.bf16 %v136, %v135
    %v138 = vld [vmem:[#allocation5] sm:$0xff]
    %v139 = vld [vmem:[#allocation5 + $0x8] sm:$0xf]
    %v140 = vld [vmem:[#allocation5 + $0xc] sm:$0xff]
    %v141 = vld [vmem:[#allocation5 + $0x14] sm:$0xf]
    %v142 = vld [vmem:[#allocation5 + $0x18] sm:$0xff]
    %v143 = vld [vmem:[#allocation5 + $0x20] sm:$0xf]
    %v144 = vld [vmem:[#allocation5 + $0x24] sm:$0xff]
    %v145 = vld [vmem:[#allocation5 + $0x2c] sm:$0xf]
    %v146 = vld [vmem:[#allocation5 + $0x30] sm:$0xff]
    %v147 = vld [vmem:[#allocation5 + $0x38] sm:$0xf]
    %v148 = vld [vmem:[#allocation5 + $0x3c] sm:$0xff]
    %v149 = vld [vmem:[#allocation5 + $0x44] sm:$0xf]
    %v150 = vld [vmem:[#allocation5 + $0x48] sm:$0xff]
    %v151 = vld [vmem:[#allocation5 + $0x50] sm:$0xf]
    %v152 = vld [vmem:[#allocation5 + $0x54] sm:$0xff]
    %v153 = vld [vmem:[#allocation5 + $0x5c] sm:$0xf]
    %v154 = vld [vmem:[#allocation5 + $0x60] sm:$0xff]
    %v155 = vld [vmem:[#allocation5 + $0x68] sm:$0xf]
    %v156 = vld [vmem:[#allocation5 + $0x6c] sm:$0xff]
    %v157 = vld [vmem:[#allocation5 + $0x74] sm:$0xf]
    %v158 = vld [vmem:[#allocation5 + $0x78] sm:$0xff]
    %v159 = vld [vmem:[#allocation5 + $0x80] sm:$0xf]
    %v160 = vld [vmem:[#allocation5 + $0x84] sm:$0xff]
    %v161 = vld [vmem:[#allocation5 + $0x8c] sm:$0xf]
    %v162 = vld [vmem:[#allocation5 + $0x90] sm:$0xff]
    %v163 = vld [vmem:[#allocation5 + $0x98] sm:$0xf]
    %v164 = vld [vmem:[#allocation5 + $0x9c] sm:$0xff]
    %v165 = vld [vmem:[#allocation5 + $0xa4] sm:$0xf]
    %v166 = vld [vmem:[#allocation5 + $0xa8] sm:$0xff]
    %v167 = vld [vmem:[#allocation5 + $0xb0] sm:$0xf]
    %v168 = vld [vmem:[#allocation5 + $0xb4] sm:$0xff]
    %v169 = vld [vmem:[#allocation5 + $0xbc] sm:$0xf]
    %v170 = vld [vmem:[%s3] sm:$0x7]
    %v172 = vlaneseq
    %v173 = vshrl.u32 %v172, 7
    %v174 = vsub.s32 0, %v173
    %v175 = vrot.slane %v170, %v174
    %v176 = vlaneseq
    %v177 = vshrl.u32 %v176, 7
    %v178 = vsub.s32 1, %v177
    %v179 = vrot.slane %v170, %v178
    %v180 = vlaneseq
    %v181 = vshrl.u32 %v180, 7
    %v182 = vsub.s32 2, %v181
    %v183 = vrot.slane %v170, %v182
    %v219 = vunpack.c.l.b16 %v138
    %v220 = vunpack.c.h.b16 %v138
    %v221 = vunpack.c.l.b16 %v139
    %v222 = vunpack.c.l.b16 %v140
    %v223 = vunpack.c.h.b16 %v140
    %v224 = vunpack.c.l.b16 %v141
    %v225 = vunpack.c.l.b16 %v142
    %v226 = vunpack.c.h.b16 %v142
    %v227 = vunpack.c.l.b16 %v143
    %v228 = vunpack.c.l.b16 %v144
    %v229 = vunpack.c.h.b16 %v144
    %v230 = vunpack.c.l.b16 %v145
    %v231 = vunpack.c.l.b16 %v146
    %v232 = vunpack.c.h.b16 %v146
    %v233 = vunpack.c.l.b16 %v147
    %v234 = vunpack.c.l.b16 %v148
    %v235 = vunpack.c.h.b16 %v148
    %v236 = vunpack.c.l.b16 %v149
    %v237 = vunpack.c.l.b16 %v150
    %v238 = vunpack.c.h.b16 %v150
    %v239 = vunpack.c.l.b16 %v151
    %v240 = vunpack.c.l.b16 %v152
    %v241 = vunpack.c.h.b16 %v152
    %v242 = vunpack.c.l.b16 %v153
    %v243 = vunpack.c.l.b16 %v154
    %v244 = vunpack.c.h.b16 %v154
    %v245 = vunpack.c.l.b16 %v155
    %v246 = vunpack.c.l.b16 %v156
    %v247 = vunpack.c.h.b16 %v156
    %v248 = vunpack.c.l.b16 %v157
    %v249 = vunpack.c.l.b16 %v158
    %v250 = vunpack.c.h.b16 %v158
    %v251 = vunpack.c.l.b16 %v159
    %v252 = vunpack.c.l.b16 %v160
    %v253 = vunpack.c.h.b16 %v160
    %v254 = vunpack.c.l.b16 %v161
    %v255 = vunpack.c.l.b16 %v162
    %v256 = vunpack.c.h.b16 %v162
    %v257 = vunpack.c.l.b16 %v163
    %v258 = vunpack.c.l.b16 %v164
    %v259 = vunpack.c.h.b16 %v164
    %v260 = vunpack.c.l.b16 %v165
    %v261 = vunpack.c.l.b16 %v166
    %v262 = vunpack.c.h.b16 %v166
    %v263 = vunpack.c.l.b16 %v167
    %v264 = vunpack.c.l.b16 %v168
    %v265 = vunpack.c.h.b16 %v168
    %v266 = vunpack.c.l.b16 %v169
    %v267 = vpack.c.b16 %v222, %v219
    %v268 = vpack.c.b16 %v223, %v220
    %v269 = vpack.c.b16 %v224, %v221
    %v270 = vpack.c.b16 %v228, %v225
    %v271 = vpack.c.b16 %v229, %v226
    %v272 = vpack.c.b16 %v230, %v227
    %v273 = vpack.c.b16 %v234, %v231
    %v274 = vpack.c.b16 %v235, %v232
    %v275 = vpack.c.b16 %v236, %v233
    %v276 = vpack.c.b16 %v240, %v237
    %v277 = vpack.c.b16 %v241, %v238
    %v278 = vpack.c.b16 %v242, %v239
    %v279 = vpack.c.b16 %v246, %v243
    %v280 = vpack.c.b16 %v247, %v244
    %v281 = vpack.c.b16 %v248, %v245
    %v282 = vpack.c.b16 %v252, %v249
    %v283 = vpack.c.b16 %v253, %v250
    %v284 = vpack.c.b16 %v254, %v251
    %v285 = vpack.c.b16 %v258, %v255
    %v286 = vpack.c.b16 %v259, %v256
    %v287 = vpack.c.b16 %v260, %v257
    %v288 = vpack.c.b16 %v264, %v261
    %v289 = vpack.c.b16 %v265, %v262
    %v290 = vpack.c.b16 %v266, %v263
    %315 = vmatprep.subr.bf16.mxu0 %v268
    %316 = vmatpush1.bf16.msra.mxu0 %v267
    %317 = vmatprep.subr.bf16.mxu0 %v271
    %318 = vmatpush1.bf16.msra.mxu0 %v270
    %319 = vmatprep.subr.bf16.mxu0 %v274
    %320 = vmatpush1.bf16.msra.mxu0 %v273
    %321 = vmatprep.subr.bf16.mxu0 %v277
    %322 = vmatpush1.bf16.msra.mxu0 %v276
    %323 = vmatprep.subr.bf16.mxu0 %v280
    %324 = vmatpush1.bf16.msra.mxu0 %v279
    %325 = vmatprep.subr.bf16.mxu0 %v283
    %326 = vmatpush1.bf16.msra.mxu0 %v282
    %327 = vmatprep.subr.bf16.mxu0 %v286
    %328 = vmatpush1.bf16.msra.mxu0 %v285
    %329 = vmatprep.subr.bf16.mxu0 %v289
    %330 = vmatpush1.bf16.msra.mxu0 %v288
    %331 = vmatprep.subr.bf16.mxu0 0
    %332 = vmatpush1.bf16.msra.mxu0 0
    %333 = vmatprep.subr.bf16.mxu0 0
    %334 = vmatpush1.bf16.msra.mxu0 0
    %335 = vmatprep.subr.bf16.mxu0 0
    %336 = vmatpush1.bf16.msra.mxu0 0
    %337 = vmatprep.subr.bf16.mxu0 0
    %338 = vmatpush1.bf16.msra.mxu0 0
    %339 = vmatprep.subr.bf16.mxu0 0
    %340 = vmatpush1.bf16.msra.mxu0 0
    %341 = vmatprep.subr.bf16.mxu0 0
    %342 = vmatpush1.bf16.msra.mxu0 0
    %343 = vmatprep.subr.bf16.mxu0 0
    %344 = vmatpush1.bf16.msra.mxu0 0
    %345 = vmatprep.subr.bf16.mxu0 0
    %346 = vmatpush1.bf16.msra.mxu0 0
    %347 = vmatprep.mubr.bf16.mxu0 0
    %348 = vmatmul.mubr.bf16.gmra.mrb[0].mxu0 %v137
    %v349 = vpop.f32.mrb[0].mxu0
    %v350 = vadd.f32 %v175, %v349
    %v351 = vpop.f32.mrb[0].mxu0
    %v352 = vadd.f32 %v179, %v351
    %v353 = vpop.f32.mrb[0].mxu0
    %v354 = vadd.f32 %v175, %v353
    %v355 = vpop.f32.mrb[0].mxu0
    %v356 = vadd.f32 %v179, %v355
    %357 = vdwg.mxu0
    %358 = vmatprep.subr.bf16.mxu0 0
    %359 = vmatpush1.bf16.msra.mxu0 %v269
    %360 = vmatprep.subr.bf16.mxu0 0
    %361 = vmatpush1.bf16.msra.mxu0 %v272
    %362 = vmatprep.subr.bf16.mxu0 0
    %363 = vmatpush1.bf16.msra.mxu0 %v275
    %364 = vmatprep.subr.bf16.mxu0 0
    %365 = vmatpush1.bf16.msra.mxu0 %v278
    %366 = vmatprep.subr.bf16.mxu0 0
    %367 = vmatpush1.bf16.msra.mxu0 %v281
    %368 = vmatprep.subr.bf16.mxu0 0
    %369 = vmatpush1.bf16.msra.mxu0 %v284
    %370 = vmatprep.subr.bf16.mxu0 0
    %371 = vmatpush1.bf16.msra.mxu0 %v287
    %372 = vmatprep.subr.bf16.mxu0 0
    %373 = vmatpush1.bf16.msra.mxu0 %v290
    %374 = vmatprep.subr.bf16.mxu0 0
    %375 = vmatpush1.bf16.msra.mxu0 0
    %376 = vmatprep.subr.bf16.mxu0 0
    %377 = vmatpush1.bf16.msra.mxu0 0
    %378 = vmatprep.subr.bf16.mxu0 0
    %379 = vmatpush1.bf16.msra.mxu0 0
    %380 = vmatprep.subr.bf16.mxu0 0
    %381 = vmatpush1.bf16.msra.mxu0 0
    %382 = vmatprep.subr.bf16.mxu0 0
    %383 = vmatpush1.bf16.msra.mxu0 0
    %384 = vmatprep.subr.bf16.mxu0 0
    %385 = vmatpush1.bf16.msra.mxu0 0
    %386 = vmatprep.subr.bf16.mxu0 0
    %387 = vmatpush1.bf16.msra.mxu0 0
    %388 = vmatprep.subr.bf16.mxu0 0
    %389 = vmatpush1.bf16.msra.mxu0 0
    %390 = vmatprep.mubr.bf16.mxu0 0
    %391 = vmatmul.mubr.bf16.gmra.mrb[0].mxu0 %v137
    %v392 = vpop.f32.mrb[0].mxu0
    %v393 = vadd.f32 %v183, %v392
    %v394 = vpop.f32.mrb[0].mxu0
    %v395 = vpop.f32.mrb[0].mxu0
    %v396 = vadd.f32 %v183, %v395
    %v397 = vpop.f32.mrb[0].mxu0
    %398 = vdwg.mxu0
    %v399 = vpack.c.bf16 %v350, %v350
    %v400 = vpack.c.bf16 %v354, %v354
    %v401 = vpack.c.bf16 %v352, %v352
    %v402 = vpack.c.bf16 %v356, %v356
    %v403 = vpack.c.bf16 %v393, %v393
    %v404 = vpack.c.bf16 %v396, %v396
    %405 = vmatprep.subr.bf16.mxu0 0
    %406 = vmatpush1.bf16.xpose.msra.mxu0 %v401
    %407 = vmatprep.subr.bf16.mxu0 0
    %408 = vmatpush1.bf16.xpose.msra.mxu0 0
    %409 = vmatprep.subr.bf16.mxu0 0
    %410 = vmatpush1.bf16.xpose.msra.mxu0 0
    %411 = vmatprep.subr.bf16.mxu0 0
    %412 = vmatpush1.bf16.xpose.msra.mxu0 0
    %413 = vmatprep.subr.bf16.mxu0 0
    %414 = vmatpush1.bf16.xpose.msra.mxu0 0
    %415 = vmatprep.subr.bf16.mxu0 0
    %416 = vmatpush1.bf16.xpose.msra.mxu0 0
    %417 = vmatprep.subr.bf16.mxu0 0
    %418 = vmatpush1.bf16.xpose.msra.mxu0 0
    %419 = vmatprep.subr.bf16.mxu0 0
    %420 = vmatpush1.bf16.xpose.msra.mxu0 0
    %421 = vmatprep.subr.bf16.mxu0 0
    %422 = vmatpush1.bf16.xpose.msra.mxu0 0
    %423 = vmatprep.subr.bf16.mxu0 0
    %424 = vmatpush1.bf16.xpose.msra.mxu0 0
    %425 = vmatprep.subr.bf16.mxu0 0
    %426 = vmatpush1.bf16.xpose.msra.mxu0 0
    %427 = vmatprep.subr.bf16.mxu0 0
    %428 = vmatpush1.bf16.xpose.msra.mxu0 0
    %429 = vmatprep.subr.bf16.mxu0 0
    %430 = vmatpush1.bf16.xpose.msra.mxu0 0
    %431 = vmatprep.subr.bf16.mxu0 0
    %432 = vmatpush1.bf16.xpose.msra.mxu0 0
    %433 = vmatprep.subr.bf16.mxu0 0
    %434 = vmatpush1.bf16.xpose.msra.mxu0 0
    %435 = vmatprep.subr.bf16.mxu0 0
    %436 = vmatpush1.bf16.xpose.msra.mxu0 0
    %437 = vmatprep.mubr.bf16.mxu0 0
    %438 = vmatmul.mubr.bf16.gmra.mrb[0].mxu0 %v399
    %v439 = vpop.f32.mrb[0].mxu0
    %v440 = vadd.f32 0.0, %v439
    %v441 = vpop.f32.mrb[0].mxu0
    %v442 = vpop.f32.mrb[0].mxu0
    %v443 = vpop.f32.mrb[0].mxu0
    %444 = vdwg.mxu0
    %445 = vmatprep.subr.bf16.mxu0 0
    %446 = vmatpush1.bf16.xpose.msra.mxu0 %v402
    %447 = vmatprep.subr.bf16.mxu0 0
    %448 = vmatpush1.bf16.xpose.msra.mxu0 0
    %449 = vmatprep.subr.bf16.mxu0 0
    %450 = vmatpush1.bf16.xpose.msra.mxu0 0
    %451 = vmatprep.subr.bf16.mxu0 0
    %452 = vmatpush1.bf16.xpose.msra.mxu0 0
    %453 = vmatprep.subr.bf16.mxu0 0
    %454 = vmatpush1.bf16.xpose.msra.mxu0 0
    %455 = vmatprep.subr.bf16.mxu0 0
    %456 = vmatpush1.bf16.xpose.msra.mxu0 0
    %457 = vmatprep.subr.bf16.mxu0 0
    %458 = vmatpush1.bf16.xpose.msra.mxu0 0
    %459 = vmatprep.subr.bf16.mxu0 0
    %460 = vmatpush1.bf16.xpose.msra.mxu0 0
    %461 = vmatprep.subr.bf16.mxu0 0
    %462 = vmatpush1.bf16.xpose.msra.mxu0 0
    %463 = vmatprep.subr.bf16.mxu0 0
    %464 = vmatpush1.bf16.xpose.msra.mxu0 0
    %465 = vmatprep.subr.bf16.mxu0 0
    %466 = vmatpush1.bf16.xpose.msra.mxu0 0
    %467 = vmatprep.subr.bf16.mxu0 0
    %468 = vmatpush1.bf16.xpose.msra.mxu0 0
    %469 = vmatprep.subr.bf16.mxu0 0
    %470 = vmatpush1.bf16.xpose.msra.mxu0 0
    %471 = vmatprep.subr.bf16.mxu0 0
    %472 = vmatpush1.bf16.xpose.msra.mxu0 0
    %473 = vmatprep.subr.bf16.mxu0 0
    %474 = vmatpush1.bf16.xpose.msra.mxu0 0
    %475 = vmatprep.subr.bf16.mxu0 0
    %476 = vmatpush1.bf16.xpose.msra.mxu0 0
    %477 = vmatprep.mubr.bf16.mxu0 0
    %478 = vmatmul.mubr.bf16.gmra.mrb[0].mxu0 %v400
    %v479 = vpop.f32.mrb[0].mxu0
    %v480 = vadd.f32 0.0, %v479
    %v481 = vpop.f32.mrb[0].mxu0
    %v482 = vpop.f32.mrb[0].mxu0
    %v483 = vpop.f32.mrb[0].mxu0
    %484 = vdwg.mxu0
    %vm485 = vcmask 64512
    %v486 = vsel %vm485, %v440, -inf
    %487 = vmax.xlane.f32.xlu0 %v486
    %v488 = vpop.xlane.xlu0 %487
    %v489 = vsel %vm485, %v480, -inf
    %490 = vmax.xlane.f32.xlu0 %v489
    %v491 = vpop.xlane.xlu0 %490
    %v492 = vsub.f32 %v440, %v488
    %v493 = vsub.f32 %v480, %v491
    %v494 = vmul.f32 %v492, 1.442695
    %v495 = vpow.pop %v494
    %v496 = vmul.f32 %v493, 1.442695
    %v497 = vpow.pop %v496
    %v498 = vsel %vm485, %v495, 0.0
    %499 = vadd.xlane.f32.xlu0 %v498
    %v500 = vpop.xlane.xlu0 %499
    %v501 = vsel %vm485, %v497, 0.0
    %502 = vadd.xlane.f32.xlu0 %v501
    %v503 = vpop.xlane.xlu0 %502
    %v504 = vrcp.pop %v500
    %v505 = vmul.f32 %v495, %v504
    %v506 = vrcp.pop %v503
    %v507 = vmul.f32 %v497, %v506
    %v508 = vpack.c.bf16 %v505, %v505
    %v509 = vpack.c.bf16 %v507, %v507
    %v511 = vsel %vm485, %v508, 0
    %vm513 = vcmask 1043456
    %v515 = vsel %vm513, %v403, 0
    %517 = vmatprep.subr.bf16.mxu0 0
    %518 = vmatpush1.bf16.msra.mxu0 %v515
    %519 = vmatprep.subr.bf16.mxu0 0
    %520 = vmatpush1.bf16.msra.mxu0 0
    %521 = vmatprep.subr.bf16.mxu0 0
    %522 = vmatpush1.bf16.msra.mxu0 0
    %523 = vmatprep.subr.bf16.mxu0 0
    %524 = vmatpush1.bf16.msra.mxu0 0
    %525 = vmatprep.subr.bf16.mxu0 0
    %526 = vmatpush1.bf16.msra.mxu0 0
    %527 = vmatprep.subr.bf16.mxu0 0
    %528 = vmatpush1.bf16.msra.mxu0 0
    %529 = vmatprep.subr.bf16.mxu0 0
    %530 = vmatpush1.bf16.msra.mxu0 0
    %531 = vmatprep.subr.bf16.mxu0 0
    %532 = vmatpush1.bf16.msra.mxu0 0
    %533 = vmatprep.subr.bf16.mxu0 0
    %534 = vmatpush1.bf16.msra.mxu0 0
    %535 = vmatprep.subr.bf16.mxu0 0
    %536 = vmatpush1.bf16.msra.mxu0 0
    %537 = vmatprep.subr.bf16.mxu0 0
    %538 = vmatpush1.bf16.msra.mxu0 0
    %539 = vmatprep.subr.bf16.mxu0 0
    %540 = vmatpush1.bf16.msra.mxu0 0
    %541 = vmatprep.subr.bf16.mxu0 0
    %542 = vmatpush1.bf16.msra.mxu0 0
    %543 = vmatprep.subr.bf16.mxu0 0
    %544 = vmatpush1.bf16.msra.mxu0 0
    %545 = vmatprep.subr.bf16.mxu0 0
    %546 = vmatpush1.bf16.msra.mxu0 0
    %547 = vmatprep.subr.bf16.mxu0 0
    %548 = vmatpush1.bf16.msra.mxu0 0
    %549 = vmatprep.mubr.bf16.mxu0 0
    %550 = vmatmul.mubr.bf16.gmra.mrb[0].mxu0 %v511
    %v551 = vpop.f32.mrb[0].mxu0
    %v552 = vadd.f32 0.0, %v551
    %v553 = vpop.f32.mrb[0].mxu0
    %v554 = vpop.f32.mrb[0].mxu0
    %v555 = vpop.f32.mrb[0].mxu0
    %556 = vdwg.mxu0
    %v558 = vsel %vm485, %v509, 0
    %v561 = vsel %vm513, %v404, 0
    %563 = vmatprep.subr.bf16.mxu0 0
    %564 = vmatpush1.bf16.msra.mxu0 %v561
    %565 = vmatprep.subr.bf16.mxu0 0
    %566 = vmatpush1.bf16.msra.mxu0 0
    %567 = vmatprep.subr.bf16.mxu0 0
    %568 = vmatpush1.bf16.msra.mxu0 0
    %569 = vmatprep.subr.bf16.mxu0 0
    %570 = vmatpush1.bf16.msra.mxu0 0
    %571 = vmatprep.subr.bf16.mxu0 0
    %572 = vmatpush1.bf16.msra.mxu0 0
    %573 = vmatprep.subr.bf16.mxu0 0
    %574 = vmatpush1.bf16.msra.mxu0 0
    %575 = vmatprep.subr.bf16.mxu0 0
    %576 = vmatpush1.bf16.msra.mxu0 0
    %577 = vmatprep.subr.bf16.mxu0 0
    %578 = vmatpush1.bf16.msra.mxu0 0
    %579 = vmatprep.subr.bf16.mxu0 0
    %580 = vmatpush1.bf16.msra.mxu0 0
    %581 = vmatprep.subr.bf16.mxu0 0
    %582 = vmatpush1.bf16.msra.mxu0 0
    %583 = vmatprep.subr.bf16.mxu0 0
    %584 = vmatpush1.bf16.msra.mxu0 0
    %585 = vmatprep.subr.bf16.mxu0 0
    %586 = vmatpush1.bf16.msra.mxu0 0
    %587 = vmatprep.subr.bf16.mxu0 0
    %588 = vmatpush1.bf16.msra.mxu0 0
    %589 = vmatprep.subr.bf16.mxu0 0
    %590 = vmatpush1.bf16.msra.mxu0 0
    %591 = vmatprep.subr.bf16.mxu0 0
    %592 = vmatpush1.bf16.msra.mxu0 0
    %593 = vmatprep.subr.bf16.mxu0 0
    %594 = vmatpush1.bf16.msra.mxu0 0
    %595 = vmatprep.mubr.bf16.mxu0 0
    %596 = vmatmul.mubr.bf16.gmra.mrb[0].mxu0 %v558
    %v597 = vpop.f32.mrb[0].mxu0
    %v598 = vadd.f32 0.0, %v597
    %v599 = vpop.f32.mrb[0].mxu0
    %v600 = vpop.f32.mrb[0].mxu0
    %v601 = vpop.f32.mrb[0].mxu0
    %602 = vdwg.mxu0
    %v603 = vpack.c.bf16 %v598, %v552
    %v604 = vld [vmem:[#allocation7] sm:$0xf]
    %v605 = vld [vmem:[#allocation7 + $0x4] sm:$0xf]
    %v606 = vld [vmem:[#allocation7 + $0x8] sm:$0xf]
    %v607 = vld [vmem:[#allocation7 + $0xc] sm:$0xf]
    %v608 = vld [vmem:[#allocation7 + $0x10] sm:$0xf]
    %v609 = vld [vmem:[#allocation7 + $0x14] sm:$0xf]
    %v610 = vld [vmem:[#allocation7 + $0x18] sm:$0xf]
    %v611 = vld [vmem:[#allocation7 + $0x1c] sm:$0xf]
    %v612 = vld [vmem:[#allocation7 + $0x20] sm:$0xf]
    %v613 = vld [vmem:[#allocation7 + $0x24] sm:$0xf]
    %v614 = vld [vmem:[#allocation7 + $0x28] sm:$0xf]
    %v615 = vld [vmem:[#allocation7 + $0x2c] sm:$0xf]
    %v616 = vld [vmem:[#allocation7 + $0x30] sm:$0xf]
    %v617 = vld [vmem:[#allocation7 + $0x34] sm:$0xf]
    %v618 = vld [vmem:[#allocation7 + $0x38] sm:$0xf]
    %v619 = vld [vmem:[#allocation7 + $0x3c] sm:$0xf]
    %v620 = vld [vmem:[%s5] sm:$0x1]
    %v622 = vlaneseq
    %v623 = vshrl.u32 %v622, 7
    %v624 = vsub.s32 0, %v623
    %v625 = vrot.slane %v620, %v624
    %v643 = vunpack.c.l.b16 %v604
    %v644 = vunpack.c.l.b16 %v605
    %v645 = vunpack.c.l.b16 %v606
    %v646 = vunpack.c.l.b16 %v607
    %v647 = vunpack.c.l.b16 %v608
    %v648 = vunpack.c.l.b16 %v609
    %v649 = vunpack.c.l.b16 %v610
    %v650 = vunpack.c.l.b16 %v611
    %v651 = vunpack.c.l.b16 %v612
    %v652 = vunpack.c.l.b16 %v613
    %v653 = vunpack.c.l.b16 %v614
    %v654 = vunpack.c.l.b16 %v615
    %v655 = vunpack.c.l.b16 %v616
    %v656 = vunpack.c.l.b16 %v617
    %v657 = vunpack.c.l.b16 %v618
    %v658 = vunpack.c.l.b16 %v619
    %v659 = vpack.c.b16 %v644, %v643
    %v660 = vpack.c.b16 %v646, %v645
    %v661 = vpack.c.b16 %v648, %v647
    %v662 = vpack.c.b16 %v650, %v649
    %v663 = vpack.c.b16 %v652, %v651
    %v664 = vpack.c.b16 %v654, %v653
    %v665 = vpack.c.b16 %v656, %v655
    %v666 = vpack.c.b16 %v658, %v657
    %675 = vmatprep.subr.bf16.mxu0 0
    %676 = vmatpush1.bf16.msra.mxu0 %v659
    %677 = vmatprep.subr.bf16.mxu0 0
    %678 = vmatpush1.bf16.msra.mxu0 %v660
    %679 = vmatprep.subr.bf16.mxu0 0
    %680 = vmatpush1.bf16.msra.mxu0 %v661
    %681 = vmatprep.subr.bf16.mxu0 0
    %682 = vmatpush1.bf16.msra.mxu0 %v662
    %683 = vmatprep.subr.bf16.mxu0 0
    %684 = vmatpush1.bf16.msra.mxu0 %v663
    %685 = vmatprep.subr.bf16.mxu0 0
    %686 = vmatpush1.bf16.msra.mxu0 %v664
    %687 = vmatprep.subr.bf16.mxu0 0
    %688 = vmatpush1.bf16.msra.mxu0 %v665
    %689 = vmatprep.subr.bf16.mxu0 0
    %690 = vmatpush1.bf16.msra.mxu0 %v666
    %691 = vmatprep.subr.bf16.mxu0 0
    %692 = vmatpush1.bf16.msra.mxu0 0
    %693 = vmatprep.subr.bf16.mxu0 0
    %694 = vmatpush1.bf16.msra.mxu0 0
    %695 = vmatprep.subr.bf16.mxu0 0
    %696 = vmatpush1.bf16.msra.mxu0 0
    %697 = vmatprep.subr.bf16.mxu0 0
    %698 = vmatpush1.bf16.msra.mxu0 0
    %699 = vmatprep.subr.bf16.mxu0 0
    %700 = vmatpush1.bf16.msra.mxu0 0
    %701 = vmatprep.subr.bf16.mxu0 0
    %702 = vmatpush1.bf16.msra.mxu0 0
    %703 = vmatprep.subr.bf16.mxu0 0
    %704 = vmatpush1.bf16.msra.mxu0 0
    %705 = vmatprep.subr.bf16.mxu0 0
    %706 = vmatpush1.bf16.msra.mxu0 0
    %707 = vmatprep.mubr.bf16.mxu0 0
    %708 = vmatmul.mubr.bf16.gmra.mrb[0].mxu0 %v603
    %v709 = vpop.f32.mrb[0].mxu0
    %v710 = vadd.f32 %v625, %v709
    %v711 = vpop.f32.mrb[0].mxu0
    %v712 = vpop.f32.mrb[0].mxu0
    %v713 = vadd.f32 %v625, %v712
    %v714 = vpop.f32.mrb[0].mxu0
    %715 = vdwg.mxu0
    %v716 = vadd.f32 %v135, %v710
    %v717 = vadd.f32 %v136, %v713
    %718 = vadd.xlane.f32.xlu0 %v716
    %v719 = vpop.xlane.xlu0 %718
    %720 = vadd.xlane.f32.xlu0 %v717
    %v721 = vpop.xlane.xlu0 %720
    %v722 = vmul.f32 %v719, 0.03125
    %v723 = vmul.f32 %v721, 0.03125
    %v724 = vmul.f32 %v716, %v716
    %v725 = vmul.f32 %v717, %v717
    %726 = vadd.xlane.f32.xlu0 %v724
    %v727 = vpop.xlane.xlu0 %726
    %728 = vadd.xlane.f32.xlu0 %v725
    %v729 = vpop.xlane.xlu0 %728
    %v730 = vmul.f32 %v727, 0.03125
    %v731 = vmul.f32 %v729, 0.03125
    %v732 = vmul.f32 %v722, %v722
    %v733 = vmul.f32 %v723, %v723
    %v734 = vsub.f32 %v730, %v732
    %v735 = vsub.f32 %v731, %v733
    %v736 = vmax.f32 %v734, 0.0
    %v737 = vmax.f32 %v735, 0.0
    %v738 = vsub.f32 %v716, %v722
    %v739 = vsub.f32 %v717, %v723
    %v740 = vadd.f32 %v736, 1e-05
    %v741 = vadd.f32 %v737, 1e-05
    %v742 = vrsqrt.pop %v740
    %v743 = vrsqrt.pop %v741
    %v744 = vmul.f32 %v738, %v742
    %v745 = vmul.f32 %v739, %v743
    %v746 = vld [vmem:[%s6] sm:$0x1]
    %v748 = vlaneseq
    %v749 = vshrl.u32 %v748, 7
    %v750 = vsub.s32 0, %v749
    %v751 = vrot.slane %v746, %v750
    %v753 = vmul.f32 %v744, %v751
    %v754 = vmul.f32 %v745, %v751
    %v755 = vld [vmem:[%s7] sm:$0x1]
    %v757 = vlaneseq
    %v758 = vshrl.u32 %v757, 7
    %v759 = vsub.s32 0, %v758
    %v760 = vrot.slane %v755, %v759
    %v762 = vadd.f32 %v753, %v760
    %v763 = vadd.f32 %v754, %v760
    %v764 = vpack.c.bf16 %v763, %v762
    %v765 = vld [vmem:[#allocation8] sm:$0xf]
    %v766 = vld [vmem:[#allocation8 + $0x4] sm:$0xf]
    %v767 = vld [vmem:[#allocation8 + $0x8] sm:$0xf]
    %v768 = vld [vmem:[#allocation8 + $0xc] sm:$0xf]
    %v769 = vld [vmem:[#allocation8 + $0x10] sm:$0xf]
    %v770 = vld [vmem:[#allocation8 + $0x14] sm:$0xf]
    %v771 = vld [vmem:[#allocation8 + $0x18] sm:$0xf]
    %v772 = vld [vmem:[#allocation8 + $0x1c] sm:$0xf]
    %v773 = vld [vmem:[#allocation8 + $0x20] sm:$0xf]
    %v774 = vld [vmem:[#allocation8 + $0x24] sm:$0xf]
    %v775 = vld [vmem:[#allocation8 + $0x28] sm:$0xf]
    %v776 = vld [vmem:[#allocation8 + $0x2c] sm:$0xf]
    %v777 = vld [vmem:[#allocation8 + $0x30] sm:$0xf]
    %v778 = vld [vmem:[#allocation8 + $0x34] sm:$0xf]
    %v779 = vld [vmem:[#allocation8 + $0x38] sm:$0xf]
    %v780 = vld [vmem:[#allocation8 + $0x3c] sm:$0xf]
    %v781 = vld [vmem:[%s9] sm:$0x1]
    %v783 = vlaneseq
    %v784 = vshrl.u32 %v783, 7
    %v785 = vsub.s32 0, %v784
    %v786 = vrot.slane %v781, %v785
    %v804 = vunpack.c.l.b16 %v765
    %v805 = vunpack.c.l.b16 %v766
    %v806 = vunpack.c.l.b16 %v767
    %v807 = vunpack.c.l.b16 %v768
    %v808 = vunpack.c.l.b16 %v769
    %v809 = vunpack.c.l.b16 %v770
    %v810 = vunpack.c.l.b16 %v771
    %v811 = vunpack.c.l.b16 %v772
    %v812 = vunpack.c.l.b16 %v773
    %v813 = vunpack.c.l.b16 %v774
    %v814 = vunpack.c.l.b16 %v775
    %v815 = vunpack.c.l.b16 %v776
    %v816 = vunpack.c.l.b16 %v777
    %v817 = vunpack.c.l.b16 %v778
    %v818 = vunpack.c.l.b16 %v779
    %v819 = vunpack.c.l.b16 %v780
    %v820 = vpack.c.b16 %v805, %v804
    %v821 = vpack.c.b16 %v807, %v806
    %v822 = vpack.c.b16 %v809, %v808
    %v823 = vpack.c.b16 %v811, %v810
    %v824 = vpack.c.b16 %v813, %v812
    %v825 = vpack.c.b16 %v815, %v814
    %v826 = vpack.c.b16 %v817, %v816
    %v827 = vpack.c.b16 %v819, %v818
    %836 = vmatprep.subr.bf16.mxu0 0
    %837 = vmatpush1.bf16.msra.mxu0 %v820
    %838 = vmatprep.subr.bf16.mxu0 0
    %839 = vmatpush1.bf16.msra.mxu0 %v821
    %840 = vmatprep.subr.bf16.mxu0 0
    %841 = vmatpush1.bf16.msra.mxu0 %v822
    %842 = vmatprep.subr.bf16.mxu0 0
    %843 = vmatpush1.bf16.msra.mxu0 %v823
    %844 = vmatprep.subr.bf16.mxu0 0
    %845 = vmatpush1.bf16.msra.mxu0 %v824
    %846 = vmatprep.subr.bf16.mxu0 0
    %847 = vmatpush1.bf16.msra.mxu0 %v825
    %848 = vmatprep.subr.bf16.mxu0 0
    %849 = vmatpush1.bf16.msra.mxu0 %v826
    %850 = vmatprep.subr.bf16.mxu0 0
    %851 = vmatpush1.bf16.msra.mxu0 %v827
    %852 = vmatprep.subr.bf16.mxu0 0
    %853 = vmatpush1.bf16.msra.mxu0 0
    %854 = vmatprep.subr.bf16.mxu0 0
    %855 = vmatpush1.bf16.msra.mxu0 0
    %856 = vmatprep.subr.bf16.mxu0 0
    %857 = vmatpush1.bf16.msra.mxu0 0
    %858 = vmatprep.subr.bf16.mxu0 0
    %859 = vmatpush1.bf16.msra.mxu0 0
    %860 = vmatprep.subr.bf16.mxu0 0
    %861 = vmatpush1.bf16.msra.mxu0 0
    %862 = vmatprep.subr.bf16.mxu0 0
    %863 = vmatpush1.bf16.msra.mxu0 0
    %864 = vmatprep.subr.bf16.mxu0 0
    %865 = vmatpush1.bf16.msra.mxu0 0
    %866 = vmatprep.subr.bf16.mxu0 0
    %867 = vmatpush1.bf16.msra.mxu0 0
    %868 = vmatprep.mubr.bf16.mxu0 0
    %869 = vmatmul.mubr.bf16.gmra.mrb[0].mxu0 %v764
    %v870 = vpop.f32.mrb[0].mxu0
    %v871 = vadd.f32 %v786, %v870
    %v872 = vpop.f32.mrb[0].mxu0
    %v873 = vpop.f32.mrb[0].mxu0
    %v874 = vadd.f32 %v786, %v873
    %v875 = vpop.f32.mrb[0].mxu0
    %876 = vdwg.mxu0
    %v877 = vmax.f32 %v871, 0.0
    %v878 = vmax.f32 %v874, 0.0
    %v879 = vpack.c.bf16 %v878, %v877
    %v880 = vld [vmem:[#allocation10] sm:$0xf]
    %v881 = vld [vmem:[#allocation10 + $0x4] sm:$0xf]
    %v882 = vld [vmem:[#allocation10 + $0x8] sm:$0xf]
    %v883 = vld [vmem:[#allocation10 + $0xc] sm:$0xf]
    %v884 = vld [vmem:[#allocation10 + $0x10] sm:$0xf]
    %v885 = vld [vmem:[#allocation10 + $0x14] sm:$0xf]
    %v886 = vld [vmem:[#allocation10 + $0x18] sm:$0xf]
    %v887 = vld [vmem:[#allocation10 + $0x1c] sm:$0xf]
    %v888 = vld [vmem:[#allocation10 + $0x20] sm:$0xf]
    %v889 = vld [vmem:[#allocation10 + $0x24] sm:$0xf]
    %v890 = vld [vmem:[#allocation10 + $0x28] sm:$0xf]
    %v891 = vld [vmem:[#allocation10 + $0x2c] sm:$0xf]
    %v892 = vld [vmem:[#allocation10 + $0x30] sm:$0xf]
    %v893 = vld [vmem:[#allocation10 + $0x34] sm:$0xf]
    %v894 = vld [vmem:[#allocation10 + $0x38] sm:$0xf]
    %v895 = vld [vmem:[#allocation10 + $0x3c] sm:$0xf]
    %v896 = vld [vmem:[%s11] sm:$0x1]
    %v898 = vlaneseq
    %v899 = vshrl.u32 %v898, 7
    %v900 = vsub.s32 0, %v899
    %v901 = vrot.slane %v896, %v900
    %v919 = vunpack.c.l.b16 %v880
    %v920 = vunpack.c.l.b16 %v881
    %v921 = vunpack.c.l.b16 %v882
    %v922 = vunpack.c.l.b16 %v883
    %v923 = vunpack.c.l.b16 %v884
    %v924 = vunpack.c.l.b16 %v885
    %v925 = vunpack.c.l.b16 %v886
    %v926 = vunpack.c.l.b16 %v887
    %v927 = vunpack.c.l.b16 %v888
    %v928 = vunpack.c.l.b16 %v889
    %v929 = vunpack.c.l.b16 %v890
    %v930 = vunpack.c.l.b16 %v891
    %v931 = vunpack.c.l.b16 %v892
    %v932 = vunpack.c.l.b16 %v893
    %v933 = vunpack.c.l.b16 %v894
    %v934 = vunpack.c.l.b16 %v895
    %v935 = vpack.c.b16 %v920, %v919
    %v936 = vpack.c.b16 %v922, %v921
    %v937 = vpack.c.b16 %v924, %v923
    %v938 = vpack.c.b16 %v926, %v925
    %v939 = vpack.c.b16 %v928, %v927
    %v940 = vpack.c.b16 %v930, %v929
    %v941 = vpack.c.b16 %v932, %v931
    %v942 = vpack.c.b16 %v934, %v933
    %951 = vmatprep.subr.bf16.mxu0 0
    %952 = vmatpush1.bf16.msra.mxu0 %v935
    %953 = vmatprep.subr.bf16.mxu0 0
    %954 = vmatpush1.bf16.msra.mxu0 %v936
    %955 = vmatprep.subr.bf16.mxu0 0
    %956 = vmatpush1.bf16.msra.mxu0 %v937
    %957 = vmatprep.subr.bf16.mxu0 0
    %958 = vmatpush1.bf16.msra.mxu0 %v938
    %959 = vmatprep.subr.bf16.mxu0 0
    %960 = vmatpush1.bf16.msra.mxu0 %v939
    %961 = vmatprep.subr.bf16.mxu0 0
    %962 = vmatpush1.bf16.msra.mxu0 %v940
    %963 = vmatprep.subr.bf16.mxu0 0
    %964 = vmatpush1.bf16.msra.mxu0 %v941
    %965 = vmatprep.subr.bf16.mxu0 0
    %966 = vmatpush1.bf16.msra.mxu0 %v942
    %967 = vmatprep.subr.bf16.mxu0 0
    %968 = vmatpush1.bf16.msra.mxu0 0
    %969 = vmatprep.subr.bf16.mxu0 0
    %970 = vmatpush1.bf16.msra.mxu0 0
    %971 = vmatprep.subr.bf16.mxu0 0
    %972 = vmatpush1.bf16.msra.mxu0 0
    %973 = vmatprep.subr.bf16.mxu0 0
    %974 = vmatpush1.bf16.msra.mxu0 0
    %975 = vmatprep.subr.bf16.mxu0 0
    %976 = vmatpush1.bf16.msra.mxu0 0
    %977 = vmatprep.subr.bf16.mxu0 0
    %978 = vmatpush1.bf16.msra.mxu0 0
    %979 = vmatprep.subr.bf16.mxu0 0
    %980 = vmatpush1.bf16.msra.mxu0 0
    %981 = vmatprep.subr.bf16.mxu0 0
    %982 = vmatpush1.bf16.msra.mxu0 0
    %983 = vmatprep.mubr.bf16.mxu0 0
    %984 = vmatmul.mubr.bf16.gmra.mrb[0].mxu0 %v879
    %v985 = vpop.f32.mrb[0].mxu0
    %v986 = vadd.f32 %v901, %v985
    %v987 = vpop.f32.mrb[0].mxu0
    %v988 = vpop.f32.mrb[0].mxu0
    %v989 = vadd.f32 %v901, %v988
    %v990 = vpop.f32.mrb[0].mxu0
    %991 = vdwg.mxu0
    %v992 = vadd.f32 %v762, %v986
    %v993 = vadd.f32 %v763, %v989
    %994 = vadd.xlane.f32.xlu0 %v992
    %v995 = vpop.xlane.xlu0 %994
    %996 = vadd.xlane.f32.xlu0 %v993
    %v997 = vpop.xlane.xlu0 %996
    %v998 = vmul.f32 %v995, 0.03125
    %v999 = vmul.f32 %v997, 0.03125
    %v1000 = vmul.f32 %v992, %v992
    %v1001 = vmul.f32 %v993, %v993
    %1002 = vadd.xlane.f32.xlu0 %v1000
    %v1003 = vpop.xlane.xlu0 %1002
    %1004 = vadd.xlane.f32.xlu0 %v1001
    %v1005 = vpop.xlane.xlu0 %1004
    %v1006 = vmul.f32 %v1003, 0.03125
    %v1007 = vmul.f32 %v1005, 0.03125
    %v1008 = vmul.f32 %v998, %v998
    %v1009 = vmul.f32 %v999, %v999
    %v1010 = vsub.f32 %v1006, %v1008
    %v1011 = vsub.f32 %v1007, %v1009
    %v1012 = vmax.f32 %v1010, 0.0
    %v1013 = vmax.f32 %v1011, 0.0
    %v1014 = vsub.f32 %v992, %v998
    %v1015 = vsub.f32 %v993, %v999
    %v1016 = vadd.f32 %v1012, 1e-05
    %v1017 = vadd.f32 %v1013, 1e-05
    %v1018 = vrsqrt.pop %v1016
    %v1019 = vrsqrt.pop %v1017
    %v1020 = vmul.f32 %v1014, %v1018
    %v1021 = vmul.f32 %v1015, %v1019
    %v1022 = vld [vmem:[%s12] sm:$0x1]
    %v1024 = vlaneseq
    %v1025 = vshrl.u32 %v1024, 7
    %v1026 = vsub.s32 0, %v1025
    %v1027 = vrot.slane %v1022, %v1026
    %v1029 = vmul.f32 %v1020, %v1027
    %v1030 = vmul.f32 %v1021, %v1027
    %v1031 = vld [vmem:[%s13] sm:$0x1]
    %v1033 = vlaneseq
    %v1034 = vshrl.u32 %v1033, 7
    %v1035 = vsub.s32 0, %v1034
    %v1036 = vrot.slane %v1031, %v1035
    %v1038 = vadd.f32 %v1029, %v1036
    %v1039 = vadd.f32 %v1030, %v1036
    %v1040 = vcombine.high %v1038, 0.0
    %v1042 = vunpack.c.l.s4 1983009808
    %v1043 = vunpack.c.0.s8 %v1042
    %v1044 = vlaneseq
    %v1045 = vshrl.u32 %v1044, 7
    %v1046 = vsub.s32 %v1043, %v1045
    %v1047 = vrot.slane %v1038, %v1046
    %v1049 = vunpack.c.l.s4 1983009808
    %v1050 = vunpack.c.0.s8 %v1049
    %v1051 = vlaneseq
    %v1052 = vshrl.u32 %v1051, 7
    %v1053 = vsub.s32 %v1050, %v1052
    %v1054 = vrot.slane %v1040, %v1053
    %v1055 = vcombine.high %v1039, 0.0
    %v1057 = vunpack.c.l.s4 1983009808
    %v1058 = vunpack.c.0.s8 %v1057
    %v1059 = vlaneseq
    %v1060 = vshrl.u32 %v1059, 7
    %v1061 = vsub.s32 %v1058, %v1060
    %v1062 = vrot.slane %v1039, %v1061
    %v1064 = vunpack.c.l.s4 1983009808
    %v1065 = vunpack.c.0.s8 %v1064
    %v1066 = vlaneseq
    %v1067 = vshrl.u32 %v1066, 7
    %v1068 = vsub.s32 %v1065, %v1067
    %v1069 = vrot.slane %v1055, %v1068
    %v1070 = vcombine.low %v1047, %v1062
    %v1071 = vcombine.high %v1047, %v1062
    %v1073 = vunpack.c.l.s4 1934713408
    %v1074 = vunpack.c.0.s8 %v1073
    %v1075 = vlaneseq
    %v1076 = vshrl.u32 %v1075, 7
    %v1077 = vsub.s32 %v1074, %v1076
    %v1078 = vrot.slane %v1070, %v1077
    %v1080 = vunpack.c.l.s4 1934713408
    %v1081 = vunpack.c.0.s8 %v1080
    %v1082 = vlaneseq
    %v1083 = vshrl.u32 %v1082, 7
    %v1084 = vsub.s32 %v1081, %v1083
    %v1085 = vrot.slane %v1071, %v1084
    %v1086 = vcombine.low %v1054, %v1069
    %v1087 = vcombine.high %v1054, %v1069
    %v1089 = vunpack.c.l.s4 1934713408
    %v1090 = vunpack.c.0.s8 %v1089
    %v1091 = vlaneseq
    %v1092 = vshrl.u32 %v1091, 7
    %v1093 = vsub.s32 %v1090, %v1092
    %v1094 = vrot.slane %v1086, %v1093
    %v1096 = vunpack.c.l.s4 1934713408
    %v1097 = vunpack.c.0.s8 %v1096
    %v1098 = vlaneseq
    %v1099 = vshrl.u32 %v1098, 7
    %v1100 = vsub.s32 %v1097, %v1099
    %v1101 = vrot.slane %v1087, %v1100
    %v1102 = vcombine.high %v1078, 0.0
    %v1103 = vcombine.high %v1085, 0.0
    %v1104 = vcombine.high %v1094, 0.0
    %v1105 = vcombine.high %v1101, 0.0
    %1106 = vst [vmem:[#allocation11] sm:$0x3] %v1078
    %1107 = vst [vmem:[#allocation11 + $0x2] sm:$0x3] %v1102
    %1108 = vst [vmem:[#allocation11 + $0x4] sm:$0x3] %v1085
    %1109 = vst [vmem:[#allocation11 + $0x6] sm:$0x3] %v1103
    %1110 = vst [vmem:[#allocation11 + $0x8] sm:$0x3] %v1094
    %1111 = vst [vmem:[#allocation11 + $0xa] sm:$0x3] %v1104
    %1112 = vst [vmem:[#allocation11 + $0xc] sm:$0x3] %v1101
    %1113 = vst [vmem:[#allocation11 + $0xe] sm:$0x3] %v1105
    // Predicated region
    $region78: #{tpu_custom_call.1} parent=1 // pred_check
      _
    $region79: #{tpu_custom_call.1} parent=1 // pred_check_branch
      %1115 = sbr.rel (0) target = $region81
    $region80: #{tpu_custom_call.1} parent=1 // pred_region
      %s1117 = ssub.s32 256, 256
      %1118 = vsyncadd [#allocation4], %s1117
      %s1119 = sshll.u32 [#allocation11], 4
      %s1120 = int_to_ptr.vmem [resolvable:$true] %s1119
      %1125 = dma.vmem_to_hbm [thread:$0]  %s1120, 256, %s14, [#allocation4], 32, 32, 2
    $region81: #{tpu_custom_call.1} parent=1 // pred_fallthru
      _
    // Predicated region
    $region82: #{tpu_custom_call.1} parent=1 // pred_check
      _
    $region83: #{tpu_custom_call.1} parent=1 // pred_check_branch
      %1127 = sbr.rel (0) target = $region85
    $region84: #{tpu_custom_call.1} parent=1 // pred_region
      %1128 = dma.done [#allocation4], 256
    $region85: #{tpu_custom_call.1} parent=1 // pred_fallthru
      _
    %1129 = vsyncpa [#allocation3], 1
    %1130 = vsyncpa [#allocation6], 1
    %1131 = vsyncpa [#allocation9], 1
    %1132 = vsyncpa [#allocation4], 1

// kernel: tpu_custom_call.1
$region0: #{tpu_custom_call.1}
  #allocation0 [shape = 'u32[]', space=smem, size = 0x4, offset = 0x4, fixed_abs, tag = 'smem constant byte address 0x4 - core index']
  #allocation1 [shape = 'u32[144,128]{1,0:T(1,128)}', space=vmem, size = 0x12000, scoped, tag = 'internal scratch']
  %s0 = inlined_call_operand.hbm [shape: f32[2,8,128], index: 0, kind: input, shape index: {}]
  %s1 = inlined_call_operand.vmem [shape: f32[2,1,128], index: 1, kind: input, shape index: {}]
  %s2 = inlined_call_operand.hbm [shape: bf16[128,384], index: 2, kind: input, shape index: {}]
  %s3 = inlined_call_operand.vmem [shape: f32[1,384], index: 3, kind: input, shape index: {}]
  %s4 = inlined_call_operand.hbm [shape: bf16[128,128], index: 4, kind: input, shape index: {}]
  %s5 = inlined_call_operand.vmem [shape: f32[1,128], index: 5, kind: input, shape index: {}]
  %s6 = inlined_call_operand.vmem [shape: f32[1,128], index: 6, kind: input, shape index: {}]
  %s7 = inlined_call_operand.vmem [shape: f32[1,128], index: 7, kind: input, shape index: {}]
  %s8 = inlined_call_operand.hbm [shape: bf16[128,128], index: 8, kind: input, shape index: {}]
  %s9 = inlined_call_operand.vmem [shape: f32[1,128], index: 9, kind: input, shape index: {}]
  %s10 = inlined_call_operand.hbm [shape: bf16[128,128], index: 10, kind: input, shape index: {}]
  %s11 = inlined_call_operand.vmem [shape: f32[1,128], index: 11, kind: input, shape index: {}]
  %s12 = inlined_call_operand.vmem [shape: f32[1,128], index: 12, kind: input, shape index: {}]
  %s13 = inlined_call_operand.vmem [shape: f32[1,128], index: 13, kind: input, shape index: {}]
  %s14 = inlined_call_operand.hbm [shape: f32[2,8,128], index: 14, kind: output, shape index: {}]
  %s15 = sld [smem:[#allocation0]]
  $region86: #{tpu_custom_call.1} parent=0
    _
  %s17 = ssub.s32 1, %s15
  %s18 = scalar_select 0, %s17, %s15
  $region1: #{tpu_custom_call.1} parent=0
    #allocation2 [shape = 'u8[8192]{0}', space=vmem, size = 0x2000, scoped, tag = 'input window, operand 0, single buffered']
    #allocation3 [shape = 's32[1]{0}', space=sflag, size = 0x4, scoped, tag = 'scoped memory for tpu_custom_call.1']
    #allocation4 [shape = 's32[1]{0}', space=sflag, size = 0x4, scoped, tag = 'scoped memory for tpu_custom_call.1']
    #allocation5 [shape = 'u8[98304]{0}', space=vmem, size = 0x18000, scoped, tag = 'input window, operand 2, single buffered']
    #allocation6 [shape = 's32[1]{0}', space=sflag, size = 0x4, scoped, tag = 'scoped memory for tpu_custom_call.1']
    #allocation7 [shape = 'u8[32768]{0}', space=vmem, size = 0x8000, scoped, tag = 'input window, operand 4, single buffered']
    #allocation8 [shape = 'u8[32768]{0}', space=vmem, size = 0x8000, scoped, tag = 'input window, operand 8, single buffered']
    #allocation9 [shape = 's32[1]{0}', space=sflag, size = 0x4, scoped, tag = 'scoped memory for tpu_custom_call.1']
    #allocation10 [shape = 'u8[32768]{0}', space=vmem, size = 0x8000, scoped, tag = 'input window, operand 10, single buffered']
    #allocation11 [shape = 'u8[8192]{0}', space=vmem, size = 0x2000, scoped, tag = 'output window, operand 0, single buffered']
    %19 = vsyncpa [#allocation3], 0
    %20 = vsyncpa [#allocation6], 0
    %21 = vsyncpa [#allocation9], 0
    %22 = vsyncpa [#allocation4], 0
    // Predicated region
    $region2: #{tpu_custom_call.1} parent=1 // pred_check
      _
    $region3: #{tpu_custom_call.1} parent=1 // pred_check_branch
      %24 = sbr.rel (0) target = $region5
    $region4: #{tpu_custom_call.1} parent=1 // pred_region
      %s26 = ssub.s32 256, 256
      %27 = vsyncadd [#allocation3], %s26
      %s28 = sshll.u32 [#allocation2], 4
      %s29 = int_to_ptr.vmem [resolvable:$true] %s28
      %34 = dma.hbm_to_vmem [thread:$0]  %s0, 256, %s29, [#allocation3], 128, 128, 8
    $region5: #{tpu_custom_call.1} parent=1 // pred_fallthru
      _
    // Predicated region
    $region6: #{tpu_custom_call.1} parent=1 // pred_check
      _
    $region7: #{tpu_custom_call.1} parent=1 // pred_check_branch
      %36 = sbr.rel (0) target = $region9
    $region8: #{tpu_custom_call.1} parent=1 // pred_region
      _
    $region9: #{tpu_custom_call.1} parent=1 // pred_fallthru
      _
    // Predicated region
    $region10: #{tpu_custom_call.1} parent=1 // pred_check
      _
    $region11: #{tpu_custom_call.1} parent=1 // pred_check_branch
      %38 = sbr.rel (0) target = $region13
    $region12: #{tpu_custom_call.1} parent=1 // pred_region
      %s40 = ssub.s32 3072, 3072
      %41 = vsyncadd [#allocation6], %s40
      %s42 = sshll.u32 [#allocation5], 4
      %s43 = int_to_ptr.vmem [resolvable:$true] %s42
      %48 = dma.hbm_to_vmem [thread:$0]  %s2, 3072, %s43, [#allocation6], 192, 192, 12
    $region13: #{tpu_custom_call.1} parent=1 // pred_fallthru
      _
    // Predicated region
    $region14: #{tpu_custom_call.1} parent=1 // pred_check
      _
    $region15: #{tpu_custom_call.1} parent=1 // pred_check_branch
      %50 = sbr.rel (0) target = $region17
    $region16: #{tpu_custom_call.1} parent=1 // pred_region
      _
    $region17: #{tpu_custom_call.1} parent=1 // pred_fallthru
      _
    // Predicated region
    $region18: #{tpu_custom_call.1} parent=1 // pred_check
      _
    $region19: #{tpu_custom_call.1} parent=1 // pred_check_branch
      %52 = sbr.rel (0) target = $region21
    $region20: #{tpu_custom_call.1} parent=1 // pred_region
      %s54 = ssub.s32 1024, 1024
      %55 = vsyncadd [#allocation6], %s54
      %s56 = sshll.u32 [#allocation7], 4
      %s57 = int_to_ptr.vmem [resolvable:$true] %s56
      %62 = dma.hbm_to_vmem [thread:$0]  %s4, 1024, %s57, [#allocation6], 64, 64, 4
    $region21: #{tpu_custom_call.1} parent=1 // pred_fallthru
      _
    // Predicated region
    $region22: #{tpu_custom_call.1} parent=1 // pred_check
      _
    $region23: #{tpu_custom_call.1} parent=1 // pred_check_branch
      %64 = sbr.rel (0) target = $region25
    $region24: #{tpu_custom_call.1} parent=1 // pred_region
      _
    $region25: #{tpu_custom_call.1} parent=1 // pred_fallthru
      _
    // Predicated region
    $region26: #{tpu_custom_call.1} parent=1 // pred_check
      _
    $region27: #{tpu_custom_call.1} parent=1 // pred_check_branch
      %66 = sbr.rel (0) target = $region29
    $region28: #{tpu_custom_call.1} parent=1 // pred_region
      _
    $region29: #{tpu_custom_call.1} parent=1 // pred_fallthru
      _
    // Predicated region
    $region30: #{tpu_custom_call.1} parent=1 // pred_check
      _
    $region31: #{tpu_custom_call.1} parent=1 // pred_check_branch
      %68 = sbr.rel (0) target = $region33
    $region32: #{tpu_custom_call.1} parent=1 // pred_region
      _
    $region33: #{tpu_custom_call.1} parent=1 // pred_fallthru
      _
    // Predicated region
    $region34: #{tpu_custom_call.1} parent=1 // pred_check
      _
    $region35: #{tpu_custom_call.1} parent=1 // pred_check_branch
      %70 = sbr.rel (0) target = $region37
    $region36: #{tpu_custom_call.1} parent=1 // pred_region
      %s72 = ssub.s32 1024, 1024
      %73 = vsyncadd [#allocation9], %s72
      %s74 = sshll.u32 [#allocation8], 4
      %s75 = int_to_ptr.vmem [resolvable:$true] %s74
      %80 = dma.hbm_to_vmem [thread:$0]  %s8, 1024, %s75, [#allocation9], 64, 64, 4
    $region37: #{tpu_custom_call.1} parent=1 // pred_fallthru
      _
    // Predicated region
    $region38: #{tpu_custom_call.1} parent=1 // pred_check
      _
    $region39: #{tpu_custom_call.1} parent=1 // pred_check_branch
      %82 = sbr.rel (0) target = $region41
    $region40: #{tpu_custom_call.1} parent=1 // pred_region
      _
    $region41: #{tpu_custom_call.1} parent=1 // pred_fallthru
      _
    // Predicated region
    $region42: #{tpu_custom_call.1} parent=1 // pred_check
      _
    $region43: #{tpu_custom_call.1} parent=1 // pred_check_branch
      %84 = sbr.rel (0) target = $region45
    $region44: #{tpu_custom_call.1} parent=1 // pred_region
      %s86 = ssub.s32 1024, 1024
      %87 = vsyncadd [#allocation9], %s86
      %s88 = sshll.u32 [#allocation10], 4
      %s89 = int_to_ptr.vmem [resolvable:$true] %s88
      %94 = dma.hbm_to_vmem [thread:$0]  %s10, 1024, %s89, [#allocation9], 64, 64, 4
    $region45: #{tpu_custom_call.1} parent=1 // pred_fallthru
      _
    // Predicated region
    $region46: #{tpu_custom_call.1} parent=1 // pred_check
      _
    $region47: #{tpu_custom_call.1} parent=1 // pred_check_branch
      %96 = sbr.rel (0) target = $region49
    $region48: #{tpu_custom_call.1} parent=1 // pred_region
      _
    $region49: #{tpu_custom_call.1} parent=1 // pred_fallthru
      _
    // Predicated region
    $region50: #{tpu_custom_call.1} parent=1 // pred_check
      _
    $region51: #{tpu_custom_call.1} parent=1 // pred_check_branch
      %98 = sbr.rel (0) target = $region53
    $region52: #{tpu_custom_call.1} parent=1 // pred_region
      _
    $region53: #{tpu_custom_call.1} parent=1 // pred_fallthru
      _
    // Predicated region
    $region54: #{tpu_custom_call.1} parent=1 // pred_check
      _
    $region55: #{tpu_custom_call.1} parent=1 // pred_check_branch
      %100 = sbr.rel (0) target = $region57
    $region56: #{tpu_custom_call.1} parent=1 // pred_region
      _
    $region57: #{tpu_custom_call.1} parent=1 // pred_fallthru
      _
    // Predicated region
    $region58: #{tpu_custom_call.1} parent=1 // pred_check
      _
    $region59: #{tpu_custom_call.1} parent=1 // pred_check_branch
      %102 = sbr.rel (0) target = $region61
    $region60: #{tpu_custom_call.1} parent=1 // pred_region
      %103 = dma.done [#allocation3], 256
    $region61: #{tpu_custom_call.1} parent=1 // pred_fallthru
      _
    // Predicated region
    $region62: #{tpu_custom_call.1} parent=1 // pred_check
      _
    $region63: #{tpu_custom_call.1} parent=1 // pred_check_branch
      %105 = sbr.rel (0) target = $region65
    $region64: #{tpu_custom_call.1} parent=1 // pred_region
      %106 = dma.done [#allocation6], 3072
    $region65: #{tpu_custom_call.1} parent=1 // pred_fallthru
      _
    // Predicated region
    $region66: #{tpu_custom_call.1} parent=1 // pred_check
      _
    $region67: #{tpu_custom_call.1} parent=1 // pred_check_branch
      %108 = sbr.rel (0) target = $region69
    $region68: #{tpu_custom_call.1} parent=1 // pred_region
      %109 = dma.done [#allocation6], 1024
    $region69: #{tpu_custom_call.1} parent=1 // pred_fallthru
      _
    // Predicated region
    $region70: #{tpu_custom_call.1} parent=1 // pred_check
      _
    $region71: #{tpu_custom_call.1} parent=1 // pred_check_branch
      %111 = sbr.rel (0) target = $region73
    $region72: #{tpu_custom_call.1} parent=1 // pred_region
      %112 = dma.done [#allocation9], 1024
    $region73: #{tpu_custom_call.1} parent=1 // pred_fallthru
      _
    // Predicated region
    $region74: #{tpu_custom_call.1} parent=1 // pred_check
      _
    $region75: #{tpu_custom_call.1} parent=1 // pred_check_branch
      %114 = sbr.rel (0) target = $region77
    $region76: #{tpu_custom_call.1} parent=1 // pred_region
      %115 = dma.done [#allocation9], 1024
    $region77: #{tpu_custom_call.1} parent=1 // pred_fallthru
      _
    %v117 = vld [vmem:[#allocation2] sm:$0xff]
    %v118 = vld [vmem:[#allocation2 + $0x8] sm:$0xff]
    %v119 = vmul.f32 %v117, 5.656854
    %v120 = vmul.f32 %v118, 5.656854
    %v121 = vld [vmem:[%s1] sm:$0x1]
    %v122 = vld [vmem:[%s1 + $0x1] sm:$0x1]
    %v125 = vlaneseq
    %v126 = vshrl.u32 %v125, 7
    %v127 = vsub.s32 0, %v126
    %v128 = vrot.slane %v121, %v127
    %v129 = vlaneseq
    %v130 = vshrl.u32 %v129, 7
    %v131 = vsub.s32 0, %v130
    %v132 = vrot.slane %v122, %v131
    %v135 = vadd.f32 %v119, %v128
    %v136 = vadd.f32 %v120, %v132
    %v137 = vpack.c.bf16 %v136, %v135
    %v138 = vld [vmem:[#allocation5] sm:$0xff]
    %v139 = vld [vmem:[#allocation5 + $0x8] sm:$0xf]
    %v140 = vld [vmem:[#allocation5 + $0xc] sm:$0xff]
    %v141 = vld [vmem:[#allocation5 + $0x14] sm:$0xf]
    %v142 = vld [vmem:[#allocation5 + $0x18] sm:$0xff]
    %v143 = vld [vmem:[#allocation5 + $0x20] sm:$0xf]
    %v144 = vld [vmem:[#allocation5 + $0x24] sm:$0xff]
    %v145 = vld [vmem:[#allocation5 + $0x2c] sm:$0xf]
    %v146 = vld [vmem:[#allocation5 + $0x30] sm:$0xff]
    %v147 = vld [vmem:[#allocation5 + $0x38] sm:$0xf]
    %v148 = vld [vmem:[#allocation5 + $0x3c] sm:$0xff]
    %v149 = vld [vmem:[#allocation5 + $0x44] sm:$0xf]
    %v150 = vld [vmem:[#allocation5 + $0x48] sm:$0xff]
    %v151 = vld [vmem:[#allocation5 + $0x50] sm:$0xf]
    %v152 = vld [vmem:[#allocation5 + $0x54] sm:$0xff]
    %v153 = vld [vmem:[#allocation5 + $0x5c] sm:$0xf]
    %v154 = vld [vmem:[#allocation5 + $0x60] sm:$0xff]
    %v155 = vld [vmem:[#allocation5 + $0x68] sm:$0xf]
    %v156 = vld [vmem:[#allocation5 + $0x6c] sm:$0xff]
    %v157 = vld [vmem:[#allocation5 + $0x74] sm:$0xf]
    %v158 = vld [vmem:[#allocation5 + $0x78] sm:$0xff]
    %v159 = vld [vmem:[#allocation5 + $0x80] sm:$0xf]
    %v160 = vld [vmem:[#allocation5 + $0x84] sm:$0xff]
    %v161 = vld [vmem:[#allocation5 + $0x8c] sm:$0xf]
    %v162 = vld [vmem:[#allocation5 + $0x90] sm:$0xff]
    %v163 = vld [vmem:[#allocation5 + $0x98] sm:$0xf]
    %v164 = vld [vmem:[#allocation5 + $0x9c] sm:$0xff]
    %v165 = vld [vmem:[#allocation5 + $0xa4] sm:$0xf]
    %v166 = vld [vmem:[#allocation5 + $0xa8] sm:$0xff]
    %v167 = vld [vmem:[#allocation5 + $0xb0] sm:$0xf]
    %v168 = vld [vmem:[#allocation5 + $0xb4] sm:$0xff]
    %v169 = vld [vmem:[#allocation5 + $0xbc] sm:$0xf]
    %v170 = vld [vmem:[%s3] sm:$0x7]
    %v172 = vlaneseq
    %v173 = vshrl.u32 %v172, 7
    %v174 = vsub.s32 0, %v173
    %v175 = vrot.slane %v170, %v174
    %v176 = vlaneseq
    %v177 = vshrl.u32 %v176, 7
    %v178 = vsub.s32 1, %v177
    %v179 = vrot.slane %v170, %v178
    %v180 = vlaneseq
    %v181 = vshrl.u32 %v180, 7
    %v182 = vsub.s32 2, %v181
    %v183 = vrot.slane %v170, %v182
    %v219 = vunpack.c.l.b16 %v138
    %v220 = vunpack.c.h.b16 %v138
    %v221 = vunpack.c.l.b16 %v139
    %v222 = vunpack.c.l.b16 %v140
    %v223 = vunpack.c.h.b16 %v140
    %v224 = vunpack.c.l.b16 %v141
    %v225 = vunpack.c.l.b16 %v142
    %v226 = vunpack.c.h.b16 %v142
    %v227 = vunpack.c.l.b16 %v143
    %v228 = vunpack.c.l.b16 %v144
    %v229 = vunpack.c.h.b16 %v144
    %v230 = vunpack.c.l.b16 %v145
    %v231 = vunpack.c.l.b16 %v146
    %v232 = vunpack.c.h.b16 %v146
    %v233 = vunpack.c.l.b16 %v147
    %v234 = vunpack.c.l.b16 %v148
    %v235 = vunpack.c.h.b16 %v148
    %v236 = vunpack.c.l.b16 %v149
    %v237 = vunpack.c.l.b16 %v150
    %v238 = vunpack.c.h.b16 %v150
    %v239 = vunpack.c.l.b16 %v151
    %v240 = vunpack.c.l.b16 %v152
    %v241 = vunpack.c.h.b16 %v152
    %v242 = vunpack.c.l.b16 %v153
    %v243 = vunpack.c.l.b16 %v154
    %v244 = vunpack.c.h.b16 %v154
    %v245 = vunpack.c.l.b16 %v155
    %v246 = vunpack.c.l.b16 %v156
    %v247 = vunpack.c.h.b16 %v156
    %v248 = vunpack.c.l.b16 %v157
    %v249 = vunpack.c.l.b16 %v158
    %v250 = vunpack.c.h.b16 %v158
    %v251 = vunpack.c.l.b16 %v159
    %v252 = vunpack.c.l.b16 %v160
    %v253 = vunpack.c.h.b16 %v160
    %v254 = vunpack.c.l.b16 %v161
    %v255 = vunpack.c.l.b16 %v162
    %v256 = vunpack.c.h.b16 %v162
    %v257 = vunpack.c.l.b16 %v163
    %v258 = vunpack.c.l.b16 %v164
    %v259 = vunpack.c.h.b16 %v164
    %v260 = vunpack.c.l.b16 %v165
    %v261 = vunpack.c.l.b16 %v166
    %v262 = vunpack.c.h.b16 %v166
    %v263 = vunpack.c.l.b16 %v167
    %v264 = vunpack.c.l.b16 %v168
    %v265 = vunpack.c.h.b16 %v168
    %v266 = vunpack.c.l.b16 %v169
    %v267 = vpack.c.b16 %v222, %v219
    %v268 = vpack.c.b16 %v223, %v220
    %v269 = vpack.c.b16 %v224, %v221
    %v270 = vpack.c.b16 %v228, %v225
    %v271 = vpack.c.b16 %v229, %v226
    %v272 = vpack.c.b16 %v230, %v227
    %v273 = vpack.c.b16 %v234, %v231
    %v274 = vpack.c.b16 %v235, %v232
    %v275 = vpack.c.b16 %v236, %v233
    %v276 = vpack.c.b16 %v240, %v237
    %v277 = vpack.c.b16 %v241, %v238
    %v278 = vpack.c.b16 %v242, %v239
    %v279 = vpack.c.b16 %v246, %v243
    %v280 = vpack.c.b16 %v247, %v244
    %v281 = vpack.c.b16 %v248, %v245
    %v282 = vpack.c.b16 %v252, %v249
    %v283 = vpack.c.b16 %v253, %v250
    %v284 = vpack.c.b16 %v254, %v251
    %v285 = vpack.c.b16 %v258, %v255
    %v286 = vpack.c.b16 %v259, %v256
    %v287 = vpack.c.b16 %v260, %v257
    %v288 = vpack.c.b16 %v264, %v261
    %v289 = vpack.c.b16 %v265, %v262
    %v290 = vpack.c.b16 %v266, %v263
    %315 = vmatprep.subr.bf16.mxu0 %v268
    %316 = vmatpush1.bf16.msra.mxu0 %v267
    %317 = vmatprep.subr.bf16.mxu0 %v271
    %318 = vmatpush1.bf16.msra.mxu0 %v270
    %319 = vmatprep.subr.bf16.mxu0 %v274
    %320 = vmatpush1.bf16.msra.mxu0 %v273
    %321 = vmatprep.subr.bf16.mxu0 %v277
    %322 = vmatpush1.bf16.msra.mxu0 %v276
    %323 = vmatprep.subr.bf16.mxu0 %v280
    %324 = vmatpush1.bf16.msra.mxu0 %v279
    %325 = vmatprep.subr.bf16.mxu0 %v283
    %326 = vmatpush1.bf16.msra.mxu0 %v282
    %327 = vmatprep.subr.bf16.mxu0 %v286
    %328 = vmatpush1.bf16.msra.mxu0 %v285
    %329 = vmatprep.subr.bf16.mxu0 %v289
    %330 = vmatpush1.bf16.msra.mxu0 %v288
    %331 = vmatprep.subr.bf16.mxu0 0
    %332 = vmatpush1.bf16.msra.mxu0 0
    %333 = vmatprep.subr.bf16.mxu0 0
    %334 = vmatpush1.bf16.msra.mxu0 0
    %335 = vmatprep.subr.bf16.mxu0 0
    %336 = vmatpush1.bf16.msra.mxu0 0
    %337 = vmatprep.subr.bf16.mxu0 0
    %338 = vmatpush1.bf16.msra.mxu0 0
    %339 = vmatprep.subr.bf16.mxu0 0
    %340 = vmatpush1.bf16.msra.mxu0 0
    %341 = vmatprep.subr.bf16.mxu0 0
    %342 = vmatpush1.bf16.msra.mxu0 0
    %343 = vmatprep.subr.bf16.mxu0 0
    %344 = vmatpush1.bf16.msra.mxu0 0
    %345 = vmatprep.subr.bf16.mxu0 0
    %346 = vmatpush1.bf16.msra.mxu0 0
    %347 = vmatprep.mubr.bf16.mxu0 0
    %348 = vmatmul.mubr.bf16.gmra.mrb[0].mxu0 %v137
    %v349 = vpop.f32.mrb[0].mxu0
    %v350 = vadd.f32 %v175, %v349
    %v351 = vpop.f32.mrb[0].mxu0
    %v352 = vadd.f32 %v179, %v351
    %v353 = vpop.f32.mrb[0].mxu0
    %v354 = vadd.f32 %v175, %v353
    %v355 = vpop.f32.mrb[0].mxu0
    %v356 = vadd.f32 %v179, %v355
    %357 = vdwg.mxu0
    %358 = vmatprep.subr.bf16.mxu0 0
    %359 = vmatpush1.bf16.msra.mxu0 %v269
    %360 = vmatprep.subr.bf16.mxu0 0
    %361 = vmatpush1.bf16.msra.mxu0 %v272
    %362 = vmatprep.subr.bf16.mxu0 0
    %363 = vmatpush1.bf16.msra.mxu0 %v275
    %364 = vmatprep.subr.bf16.mxu0 0
    %365 = vmatpush1.bf16.msra.mxu0 %v278
    %366 = vmatprep.subr.bf16.mxu0 0
    %367 = vmatpush1.bf16.msra.mxu0 %v281
    %368 = vmatprep.subr.bf16.mxu0 0
    %369 = vmatpush1.bf16.msra.mxu0 %v284
    %370 = vmatprep.subr.bf16.mxu0 0
    %371 = vmatpush1.bf16.msra.mxu0 %v287
    %372 = vmatprep.subr.bf16.mxu0 0
    %373 = vmatpush1.bf16.msra.mxu0 %v290
    %374 = vmatprep.subr.bf16.mxu0 0
    %375 = vmatpush1.bf16.msra.mxu0 0
    %376 = vmatprep.subr.bf16.mxu0 0
    %377 = vmatpush1.bf16.msra.mxu0 0
    %378 = vmatprep.subr.bf16.mxu0 0
    %379 = vmatpush1.bf16.msra.mxu0 0
    %380 = vmatprep.subr.bf16.mxu0 0
    %381 = vmatpush1.bf16.msra.mxu0 0
    %382 = vmatprep.subr.bf16.mxu0 0
    %383 = vmatpush1.bf16.msra.mxu0 0
    %384 = vmatprep.subr.bf16.mxu0 0
    %385 = vmatpush1.bf16.msra.mxu0 0
    %386 = vmatprep.subr.bf16.mxu0 0
    %387 = vmatpush1.bf16.msra.mxu0 0
    %388 = vmatprep.subr.bf16.mxu0 0
    %389 = vmatpush1.bf16.msra.mxu0 0
    %390 = vmatprep.mubr.bf16.mxu0 0
    %391 = vmatmul.mubr.bf16.gmra.mrb[0].mxu0 %v137
    %v392 = vpop.f32.mrb[0].mxu0
    %v393 = vadd.f32 %v183, %v392
    %v394 = vpop.f32.mrb[0].mxu0
    %v395 = vpop.f32.mrb[0].mxu0
    %v396 = vadd.f32 %v183, %v395
    %v397 = vpop.f32.mrb[0].mxu0
    %398 = vdwg.mxu0
    %v399 = vpack.c.bf16 %v350, %v350
    %v400 = vpack.c.bf16 %v354, %v354
    %v401 = vpack.c.bf16 %v352, %v352
    %v402 = vpack.c.bf16 %v356, %v356
    %v403 = vpack.c.bf16 %v393, %v393
    %v404 = vpack.c.bf16 %v396, %v396
    %405 = vmatprep.subr.bf16.mxu0 0
    %406 = vmatpush1.bf16.xpose.msra.mxu0 %v401
    %407 = vmatprep.subr.bf16.mxu0 0
    %408 = vmatpush1.bf16.xpose.msra.mxu0 0
    %409 = vmatprep.subr.bf16.mxu0 0
    %410 = vmatpush1.bf16.xpose.msra.mxu0 0
    %411 = vmatprep.subr.bf16.mxu0 0
    %412 = vmatpush1.bf16.xpose.msra.mxu0 0
    %413 = vmatprep.subr.bf16.mxu0 0
    %414 = vmatpush1.bf16.xpose.msra.mxu0 0
    %415 = vmatprep.subr.bf16.mxu0 0
    %416 = vmatpush1.bf16.xpose.msra.mxu0 0
    %417 = vmatprep.subr.bf16.mxu0 0
    %418 = vmatpush1.bf16.xpose.msra.mxu0 0
    %419 = vmatprep.subr.bf16.mxu0 0
    %420 = vmatpush1.bf16.xpose.msra.mxu0 0
    %421 = vmatprep.subr.bf16.mxu0 0
    %422 = vmatpush1.bf16.xpose.msra.mxu0 0
    %423 = vmatprep.subr.bf16.mxu0 0
    %424 = vmatpush1.bf16.xpose.msra.mxu0 0
    %425 = vmatprep.subr.bf16.mxu0 0
    %426 = vmatpush1.bf16.xpose.msra.mxu0 0
    %427 = vmatprep.subr.bf16.mxu0 0
    %428 = vmatpush1.bf16.xpose.msra.mxu0 0
    %429 = vmatprep.subr.bf16.mxu0 0
    %430 = vmatpush1.bf16.xpose.msra.mxu0 0
    %431 = vmatprep.subr.bf16.mxu0 0
    %432 = vmatpush1.bf16.xpose.msra.mxu0 0
    %433 = vmatprep.subr.bf16.mxu0 0
    %434 = vmatpush1.bf16.xpose.msra.mxu0 0
    %435 = vmatprep.subr.bf16.mxu0 0
    %436 = vmatpush1.bf16.xpose.msra.mxu0 0
    %437 = vmatprep.mubr.bf16.mxu0 0
    %438 = vmatmul.mubr.bf16.gmra.mrb[0].mxu0 %v399
    %v439 = vpop.f32.mrb[0].mxu0
    %v440 = vadd.f32 0.0, %v439
    %v441 = vpop.f32.mrb[0].mxu0
    %v442 = vpop.f32.mrb[0].mxu0
    %v443 = vpop.f32.mrb[0].mxu0
    %444 = vdwg.mxu0
    %445 = vmatprep.subr.bf16.mxu0 0
    %446 = vmatpush1.bf16.xpose.msra.mxu0 %v402
    %447 = vmatprep.subr.bf16.mxu0 0
    %448 = vmatpush1.bf16.xpose.msra.mxu0 0
    %449 = vmatprep.subr.bf16.mxu0 0
    %450 = vmatpush1.bf16.xpose.msra.mxu0 0
    %451 = vmatprep.subr.bf16.mxu0 0
    %452 = vmatpush1.bf16.xpose.msra.mxu0 0
    %453 = vmatprep.subr.bf16.mxu0 0
    %454 = vmatpush1.bf16.xpose.msra.mxu0 0
    %455 = vmatprep.subr.bf16.mxu0 0
    %456 = vmatpush1.bf16.xpose.msra.mxu0 0
    %457 = vmatprep.subr.bf16.mxu0 0
    %458 = vmatpush1.bf16.xpose.msra.mxu0 0
    %459 = vmatprep.subr.bf16.mxu0 0
    %460 = vmatpush1.bf16.xpose.msra.mxu0 0
    %461 = vmatprep.subr.bf16.mxu0 0
    %462 = vmatpush1.bf16.xpose.msra.mxu0 0
    %463 = vmatprep.subr.bf16.mxu0 0
    %464 = vmatpush1.bf16.xpose.msra.mxu0 0
    %465 = vmatprep.subr.bf16.mxu0 0
    %466 = vmatpush1.bf16.xpose.msra.mxu0 0
    %467 = vmatprep.subr.bf16.mxu0 0
    %468 = vmatpush1.bf16.xpose.msra.mxu0 0
    %469 = vmatprep.subr.bf16.mxu0 0
    %470 = vmatpush1.bf16.xpose.msra.mxu0 0
    %471 = vmatprep.subr.bf16.mxu0 0
    %472 = vmatpush1.bf16.xpose.msra.mxu0 0
    %473 = vmatprep.subr.bf16.mxu0 0
    %474 = vmatpush1.bf16.xpose.msra.mxu0 0
    %475 = vmatprep.subr.bf16.mxu0 0
    %476 = vmatpush1.bf16.xpose.msra.mxu0 0
    %477 = vmatprep.mubr.bf16.mxu0 0
    %478 = vmatmul.mubr.bf16.gmra.mrb[0].mxu0 %v400
    %v479 = vpop.f32.mrb[0].mxu0
    %v480 = vadd.f32 0.0, %v479
    %v481 = vpop.f32.mrb[0].mxu0
    %v482 = vpop.f32.mrb[0].mxu0
    %v483 = vpop.f32.mrb[0].mxu0
    %484 = vdwg.mxu0
    %vm485 = vcmask 64512
    %v486 = vsel %vm485, %v440, -inf
    %487 = vmax.xlane.f32.xlu0 %v486
    %v488 = vpop.xlane.xlu0 %487
    %v489 = vsel %vm485, %v480, -inf
    %490 = vmax.xlane.f32.xlu0 %v489
    %v491 = vpop.xlane.xlu0 %490
    %v492 = vsub.f32 %v440, %v488
    %v493 = vsub.f32 %v480, %v491
    %v494 = vmul.f32 %v492, 1.442695
    %v495 = vpow.pop %v494
    %v496 = vmul.f32 %v493, 1.442695
    %v497 = vpow.pop %v496
    %v498 = vsel %vm485, %v495, 0.0
    %499 = vadd.xlane.f32.xlu0 %v498
    %v500 = vpop.xlane.xlu0 %499
    %v501 = vsel %vm485, %v497, 0.0
    %502 = vadd.xlane.f32.xlu0 %v501
    %v503 = vpop.xlane.xlu0 %502
    %v504 = vrcp.pop %v500
    %v505 = vmul.f32 %v495, %v504
    %v506 = vrcp.pop %v503
    %v507 = vmul.f32 %v497, %v506
    %v508 = vpack.c.bf16 %v505, %v505
    %v509 = vpack.c.bf16 %v507, %v507
    %v511 = vsel %vm485, %v508, 0
    %vm513 = vcmask 1043456
    %v515 = vsel %vm513, %v403, 0
    %517 = vmatprep.subr.bf16.mxu0 0
    %518 = vmatpush1.bf16.msra.mxu0 %v515
    %519 = vmatprep.subr.bf16.mxu0 0
    %520 = vmatpush1.bf16.msra.mxu0 0
    %521 = vmatprep.subr.bf16.mxu0 0
    %522 = vmatpush1.bf16.msra.mxu0 0
    %523 = vmatprep.subr.bf16.mxu0 0
    %524 = vmatpush1.bf16.msra.mxu0 0
    %525 = vmatprep.subr.bf16.mxu0 0
    %526 = vmatpush1.bf16.msra.mxu0 0
    %527 = vmatprep.subr.bf16.mxu0 0
    %528 = vmatpush1.bf16.msra.mxu0 0
    %529 = vmatprep.subr.bf16.mxu0 0
    %530 = vmatpush1.bf16.msra.mxu0 0
    %531 = vmatprep.subr.bf16.mxu0 0
    %532 = vmatpush1.bf16.msra.mxu0 0
    %533 = vmatprep.subr.bf16.mxu0 0
    %534 = vmatpush1.bf16.msra.mxu0 0
    %535 = vmatprep.subr.bf16.mxu0 0
    %536 = vmatpush1.bf16.msra.mxu0 0
    %537 = vmatprep.subr.bf16.mxu0 0
    %538 = vmatpush1.bf16.msra.mxu0 0
    %539 = vmatprep.subr.bf16.mxu0 0
    %540 = vmatpush1.bf16.msra.mxu0 0
    %541 = vmatprep.subr.bf16.mxu0 0
    %542 = vmatpush1.bf16.msra.mxu0 0
    %543 = vmatprep.subr.bf16.mxu0 0
    %544 = vmatpush1.bf16.msra.mxu0 0
    %545 = vmatprep.subr.bf16.mxu0 0
    %546 = vmatpush1.bf16.msra.mxu0 0
    %547 = vmatprep.subr.bf16.mxu0 0
    %548 = vmatpush1.bf16.msra.mxu0 0
    %549 = vmatprep.mubr.bf16.mxu0 0
    %550 = vmatmul.mubr.bf16.gmra.mrb[0].mxu0 %v511
    %v551 = vpop.f32.mrb[0].mxu0
    %v552 = vadd.f32 0.0, %v551
    %v553 = vpop.f32.mrb[0].mxu0
    %v554 = vpop.f32.mrb[0].mxu0
    %v555 = vpop.f32.mrb[0].mxu0
    %556 = vdwg.mxu0
    %v558 = vsel %vm485, %v509, 0
    %v561 = vsel %vm513, %v404, 0
    %563 = vmatprep.subr.bf16.mxu0 0
    %564 = vmatpush1.bf16.msra.mxu0 %v561
    %565 = vmatprep.subr.bf16.mxu0 0
    %566 = vmatpush1.bf16.msra.mxu0 0
    %567 = vmatprep.subr.bf16.mxu0 0
    %568 = vmatpush1.bf16.msra.mxu0 0
    %569 = vmatprep.subr.bf16.mxu0 0
    %570 = vmatpush1.bf16.msra.mxu0 0
    %571 = vmatprep.subr.bf16.mxu0 0
    %572 = vmatpush1.bf16.msra.mxu0 0
    %573 = vmatprep.subr.bf16.mxu0 0
    %574 = vmatpush1.bf16.msra.mxu0 0
    %575 = vmatprep.subr.bf16.mxu0 0
    %576 = vmatpush1.bf16.msra.mxu0 0
    %577 = vmatprep.subr.bf16.mxu0 0
    %578 = vmatpush1.bf16.msra.mxu0 0
    %579 = vmatprep.subr.bf16.mxu0 0
    %580 = vmatpush1.bf16.msra.mxu0 0
    %581 = vmatprep.subr.bf16.mxu0 0
    %582 = vmatpush1.bf16.msra.mxu0 0
    %583 = vmatprep.subr.bf16.mxu0 0
    %584 = vmatpush1.bf16.msra.mxu0 0
    %585 = vmatprep.subr.bf16.mxu0 0
    %586 = vmatpush1.bf16.msra.mxu0 0
    %587 = vmatprep.subr.bf16.mxu0 0
    %588 = vmatpush1.bf16.msra.mxu0 0
    %589 = vmatprep.subr.bf16.mxu0 0
    %590 = vmatpush1.bf16.msra.mxu0 0
    %591 = vmatprep.subr.bf16.mxu0 0
    %592 = vmatpush1.bf16.msra.mxu0 0
    %593 = vmatprep.subr.bf16.mxu0 0
    %594 = vmatpush1.bf16.msra.mxu0 0
    %595 = vmatprep.mubr.bf16.mxu0 0
    %596 = vmatmul.mubr.bf16.gmra.mrb[0].mxu0 %v558
    %v597 = vpop.f32.mrb[0].mxu0
    %v598 = vadd.f32 0.0, %v597
    %v599 = vpop.f32.mrb[0].mxu0
    %v600 = vpop.f32.mrb[0].mxu0
    %v601 = vpop.f32.mrb[0].mxu0
    %602 = vdwg.mxu0
    %v603 = vpack.c.bf16 %v598, %v552
    %v604 = vld [vmem:[#allocation7] sm:$0xf]
    %v605 = vld [vmem:[#allocation7 + $0x4] sm:$0xf]
    %v606 = vld [vmem:[#allocation7 + $0x8] sm:$0xf]
    %v607 = vld [vmem:[#allocation7 + $0xc] sm:$0xf]
    %v608 = vld [vmem:[#allocation7 + $0x10] sm:$0xf]
    %v609 = vld [vmem:[#allocation7 + $0x14] sm:$0xf]
    %v610 = vld [vmem:[#allocation7 + $0x18] sm:$0xf]
    %v611 = vld [vmem:[#allocation7 + $0x1c] sm:$0xf]
    %v612 = vld [vmem:[#allocation7 + $0x20] sm:$0xf]
    %v613 = vld [vmem:[#allocation7 + $0x24] sm:$0xf]
    %v614 = vld [vmem:[#allocation7 + $0x28] sm:$0xf]
    %v615 = vld [vmem:[#allocation7 + $0x2c] sm:$0xf]
    %v616 = vld [vmem:[#allocation7 + $0x30] sm:$0xf]
    %v617 = vld [vmem:[#allocation7 + $0x34] sm:$0xf]
    %v618 = vld [vmem:[#allocation7 + $0x38] sm:$0xf]
    %v619 = vld [vmem:[#allocation7 + $0x3c] sm:$0xf]
    %v620 = vld [vmem:[%s5] sm:$0x1]
    %v622 = vlaneseq
    %v623 = vshrl.u32 %v622, 7
    %v624 = vsub.s32 0, %v623
    %v625 = vrot.slane %v620, %v624
    %v643 = vunpack.c.l.b16 %v604
    %v644 = vunpack.c.l.b16 %v605
    %v645 = vunpack.c.l.b16 %v606
    %v646 = vunpack.c.l.b16 %v607
    %v647 = vunpack.c.l.b16 %v608
    %v648 = vunpack.c.l.b16 %v609
    %v649 = vunpack.c.l.b16 %v610
    %v650 = vunpack.c.l.b16 %v611
    %v651 = vunpack.c.l.b16 %v612
    %v652 = vunpack.c.l.b16 %v613
    %v653 = vunpack.c.l.b16 %v614
    %v654 = vunpack.c.l.b16 %v615
    %v655 = vunpack.c.l.b16 %v616
    %v656 = vunpack.c.l.b16 %v617
    %v657 = vunpack.c.l.b16 %v618
    %v658 = vunpack.c.l.b16 %v619
    %v659 = vpack.c.b16 %v644, %v643
    %v660 = vpack.c.b16 %v646, %v645
    %v661 = vpack.c.b16 %v648, %v647
    %v662 = vpack.c.b16 %v650, %v649
    %v663 = vpack.c.b16 %v652, %v651
    %v664 = vpack.c.b16 %v654, %v653
    %v665 = vpack.c.b16 %v656, %v655
    %v666 = vpack.c.b16 %v658, %v657
    %675 = vmatprep.subr.bf16.mxu0 0
    %676 = vmatpush1.bf16.msra.mxu0 %v659
    %677 = vmatprep.subr.bf16.mxu0 0
    %678 = vmatpush1.bf16.msra.mxu0 %v660
    %679 = vmatprep.subr.bf16.mxu0 0
    %680 = vmatpush1.bf16.msra.mxu0 %v661
    %681 = vmatprep.subr.bf16.mxu0 0
    %682 = vmatpush1.bf16.msra.mxu0 %v662
    %683 = vmatprep.subr.bf16.mxu0 0
    %684 = vmatpush1.bf16.msra.mxu0 %v663
    %685 = vmatprep.subr.bf16.mxu0 0
    %686 = vmatpush1.bf16.msra.mxu0 %v664
    %687 = vmatprep.subr.bf16.mxu0 0
    %688 = vmatpush1.bf16.msra.mxu0 %v665
    %689 = vmatprep.subr.bf16.mxu0 0
    %690 = vmatpush1.bf16.msra.mxu0 %v666
    %691 = vmatprep.subr.bf16.mxu0 0
    %692 = vmatpush1.bf16.msra.mxu0 0
    %693 = vmatprep.subr.bf16.mxu0 0
    %694 = vmatpush1.bf16.msra.mxu0 0
    %695 = vmatprep.subr.bf16.mxu0 0
    %696 = vmatpush1.bf16.msra.mxu0 0
    %697 = vmatprep.subr.bf16.mxu0 0
    %698 = vmatpush1.bf16.msra.mxu0 0
    %699 = vmatprep.subr.bf16.mxu0 0
    %700 = vmatpush1.bf16.msra.mxu0 0
    %701 = vmatprep.subr.bf16.mxu0 0
    %702 = vmatpush1.bf16.msra.mxu0 0
    %703 = vmatprep.subr.bf16.mxu0 0
    %704 = vmatpush1.bf16.msra.mxu0 0
    %705 = vmatprep.subr.bf16.mxu0 0
    %706 = vmatpush1.bf16.msra.mxu0 0
    %707 = vmatprep.mubr.bf16.mxu0 0
    %708 = vmatmul.mubr.bf16.gmra.mrb[0].mxu0 %v603
    %v709 = vpop.f32.mrb[0].mxu0
    %v710 = vadd.f32 %v625, %v709
    %v711 = vpop.f32.mrb[0].mxu0
    %v712 = vpop.f32.mrb[0].mxu0
    %v713 = vadd.f32 %v625, %v712
    %v714 = vpop.f32.mrb[0].mxu0
    %715 = vdwg.mxu0
    %v716 = vadd.f32 %v135, %v710
    %v717 = vadd.f32 %v136, %v713
    %718 = vadd.xlane.f32.xlu0 %v716
    %v719 = vpop.xlane.xlu0 %718
    %720 = vadd.xlane.f32.xlu0 %v717
    %v721 = vpop.xlane.xlu0 %720
    %v722 = vmul.f32 %v719, 0.03125
    %v723 = vmul.f32 %v721, 0.03125
    %v724 = vmul.f32 %v716, %v716
    %v725 = vmul.f32 %v717, %v717
    %726 = vadd.xlane.f32.xlu0 %v724
    %v727 = vpop.xlane.xlu0 %726
    %728 = vadd.xlane.f32.xlu0 %v725
    %v729 = vpop.xlane.xlu0 %728
    %v730 = vmul.f32 %v727, 0.03125
    %v731 = vmul.f32 %v729, 0.03125
    %v732 = vmul.f32 %v722, %v722
    %v733 = vmul.f32 %v723, %v723
    %v734 = vsub.f32 %v730, %v732
    %v735 = vsub.f32 %v731, %v733
    %v736 = vmax.f32 %v734, 0.0
    %v737 = vmax.f32 %v735, 0.0
    %v738 = vsub.f32 %v716, %v722
    %v739 = vsub.f32 %v717, %v723
    %v740 = vadd.f32 %v736, 1e-05
    %v741 = vadd.f32 %v737, 1e-05
    %v742 = vrsqrt.pop %v740
    %v743 = vrsqrt.pop %v741
    %v744 = vmul.f32 %v738, %v742
    %v745 = vmul.f32 %v739, %v743
    %v746 = vld [vmem:[%s6] sm:$0x1]
    %v748 = vlaneseq
    %v749 = vshrl.u32 %v748, 7
    %v750 = vsub.s32 0, %v749
    %v751 = vrot.slane %v746, %v750
    %v753 = vmul.f32 %v744, %v751
    %v754 = vmul.f32 %v745, %v751
    %v755 = vld [vmem:[%s7] sm:$0x1]
    %v757 = vlaneseq
    %v758 = vshrl.u32 %v757, 7
    %v759 = vsub.s32 0, %v758
    %v760 = vrot.slane %v755, %v759
    %v762 = vadd.f32 %v753, %v760
    %v763 = vadd.f32 %v754, %v760
    %v764 = vpack.c.bf16 %v763, %v762
    %v765 = vld [vmem:[#allocation8] sm:$0xf]
    %v766 = vld [vmem:[#allocation8 + $0x4] sm:$0xf]
    %v767 = vld [vmem:[#allocation8 + $0x8] sm:$0xf]
    %v768 = vld [vmem:[#allocation8 + $0xc] sm:$0xf]
    %v769 = vld [vmem:[#allocation8 + $0x10] sm:$0xf]
    %v770 = vld [vmem:[#allocation8 + $0x14] sm:$0xf]
    %v771 = vld [vmem:[#allocation8 + $0x18] sm:$0xf]
    %v772 = vld [vmem:[#allocation8 + $0x1c] sm:$0xf]
    %v773 = vld [vmem:[#allocation8 + $0x20] sm:$0xf]
    %v774 = vld [vmem:[#allocation8 + $0x24] sm:$0xf]
    %v775 = vld [vmem:[#allocation8 + $0x28] sm:$0xf]
    %v776 = vld [vmem:[#allocation8 + $0x2c] sm:$0xf]
    %v777 = vld [vmem:[#allocation8 + $0x30] sm:$0xf]
    %v778 = vld [vmem:[#allocation8 + $0x34] sm:$0xf]
    %v779 = vld [vmem:[#allocation8 + $0x38] sm:$0xf]
    %v780 = vld [vmem:[#allocation8 + $0x3c] sm:$0xf]
    %v781 = vld [vmem:[%s9] sm:$0x1]
    %v783 = vlaneseq
    %v784 = vshrl.u32 %v783, 7
    %v785 = vsub.s32 0, %v784
    %v786 = vrot.slane %v781, %v785
    %v804 = vunpack.c.l.b16 %v765
    %v805 = vunpack.c.l.b16 %v766
    %v806 = vunpack.c.l.b16 %v767
    %v807 = vunpack.c.l.b16 %v768
    %v808 = vunpack.c.l.b16 %v769
    %v809 = vunpack.c.l.b16 %v770
    %v810 = vunpack.c.l.b16 %v771
    %v811 = vunpack.c.l.b16 %v772
    %v812 = vunpack.c.l.b16 %v773
    %v813 = vunpack.c.l.b16 %v774
    %v814 = vunpack.c.l.b16 %v775
    %v815 = vunpack.c.l.b16 %v776
    %v816 = vunpack.c.l.b16 %v777
    %v817 = vunpack.c.l.b16 %v778
    %v818 = vunpack.c.l.b16 %v779
    %v819 = vunpack.c.l.b16 %v780
    %v820 = vpack.c.b16 %v805, %v804
    %v821 = vpack.c.b16 %v807, %v806
    %v822 = vpack.c.b16 %v809, %v808
    %v823 = vpack.c.b16 %v811, %v810
    %v824 = vpack.c.b16 %v813, %v812
    %v825 = vpack.c.b16 %v815, %v814
    %v826 = vpack.c.b16 %v817, %v816
    %v827 = vpack.c.b16 %v819, %v818
    %836 = vmatprep.subr.bf16.mxu0 0
    %837 = vmatpush1.bf16.msra.mxu0 %v820
    %838 = vmatprep.subr.bf16.mxu0 0
    %839 = vmatpush1.bf16.msra.mxu0 %v821
    %840 = vmatprep.subr.bf16.mxu0 0
    %841 = vmatpush1.bf16.msra.mxu0 %v822
    %842 = vmatprep.subr.bf16.mxu0 0
    %843 = vmatpush1.bf16.msra.mxu0 %v823
    %844 = vmatprep.subr.bf16.mxu0 0
    %845 = vmatpush1.bf16.msra.mxu0 %v824
    %846 = vmatprep.subr.bf16.mxu0 0
    %847 = vmatpush1.bf16.msra.mxu0 %v825
    %848 = vmatprep.subr.bf16.mxu0 0
    %849 = vmatpush1.bf16.msra.mxu0 %v826
    %850 = vmatprep.subr.bf16.mxu0 0
    %851 = vmatpush1.bf16.msra.mxu0 %v827
    %852 = vmatprep.subr.bf16.mxu0 0
    %853 = vmatpush1.bf16.msra.mxu0 0
    %854 = vmatprep.subr.bf16.mxu0 0
    %855 = vmatpush1.bf16.msra.mxu0 0
    %856 = vmatprep.subr.bf16.mxu0 0
    %857 = vmatpush1.bf16.msra.mxu0 0
    %858 = vmatprep.subr.bf16.mxu0 0
    %859 = vmatpush1.bf16.msra.mxu0 0
    %860 = vmatprep.subr.bf16.mxu0 0
    %861 = vmatpush1.bf16.msra.mxu0 0
    %862 = vmatprep.subr.bf16.mxu0 0
    %863 = vmatpush1.bf16.msra.mxu0 0
    %864 = vmatprep.subr.bf16.mxu0 0
    %865 = vmatpush1.bf16.msra.mxu0 0
    %866 = vmatprep.subr.bf16.mxu0 0
    %867 = vmatpush1.bf16.msra.mxu0 0
    %868 = vmatprep.mubr.bf16.mxu0 0
    %869 = vmatmul.mubr.bf16.gmra.mrb[0].mxu0 %v764
    %v870 = vpop.f32.mrb[0].mxu0
    %v871 = vadd.f32 %v786, %v870
    %v872 = vpop.f32.mrb[0].mxu0
    %v873 = vpop.f32.mrb[0].mxu0
    %v874 = vadd.f32 %v786, %v873
    %v875 = vpop.f32.mrb[0].mxu0
    %876 = vdwg.mxu0
    %v877 = vmax.f32 %v871, 0.0
    %v878 = vmax.f32 %v874, 0.0
    %v879 = vpack.c.bf16 %v878, %v877
    %v880 = vld [vmem:[#allocation10] sm:$0xf]
    %v881 = vld [vmem:[#allocation10 + $0x4] sm:$0xf]
    %v882 = vld [vmem:[#allocation10 + $0x8] sm:$0xf]
    %v883 = vld [vmem:[#allocation10 + $0xc] sm:$0xf]
    %v884 = vld [vmem:[#allocation10 + $0x10] sm:$0xf]
    %v885 = vld [vmem:[#allocation10 + $0x14] sm:$0xf]
    %v886 = vld [vmem:[#allocation10 + $0x18] sm:$0xf]
    %v887 = vld [vmem:[#allocation10 + $0x1c] sm:$0xf]
    %v888 = vld [vmem:[#allocation10 + $0x20] sm:$0xf]
    %v889 = vld [vmem:[#allocation10 + $0x24] sm:$0xf]
    %v890 = vld [vmem:[#allocation10 + $0x28] sm:$0xf]
    %v891 = vld [vmem:[#allocation10 + $0x2c] sm:$0xf]
    %v892 = vld [vmem:[#allocation10 + $0x30] sm:$0xf]
    %v893 = vld [vmem:[#allocation10 + $0x34] sm:$0xf]
    %v894 = vld [vmem:[#allocation10 + $0x38] sm:$0xf]
    %v895 = vld [vmem:[#allocation10 + $0x3c] sm:$0xf]
    %v896 = vld [vmem:[%s11] sm:$0x1]
    %v898 = vlaneseq
    %v899 = vshrl.u32 %v898, 7
    %v900 = vsub.s32 0, %v899
    %v901 = vrot.slane %v896, %v900
    %v919 = vunpack.c.l.b16 %v880
    %v920 = vunpack.c.l.b16 %v881
    %v921 = vunpack.c.l.b16 %v882
    %v922 = vunpack.c.l.b16 %v883
    %v923 = vunpack.c.l.b16 %v884
    %v924 = vunpack.c.l.b16 %v885
    %v925 = vunpack.c.l.b16 %v886
    %v926 = vunpack.c.l.b16 %v887
    %v927 = vunpack.c.l.b16 %v888
    %v928 = vunpack.c.l.b16 %v889
    %v929 = vunpack.c.l.b16 %v890
    %v930 = vunpack.c.l.b16 %v891
    %v931 = vunpack.c.l.b16 %v892
    %v932 = vunpack.c.l.b16 %v893
    %v933 = vunpack.c.l.b16 %v894
    %v934 = vunpack.c.l.b16 %v895
    %v935 = vpack.c.b16 %v920, %v919
    %v936 = vpack.c.b16 %v922, %v921
    %v937 = vpack.c.b16 %v924, %v923
    %v938 = vpack.c.b16 %v926, %v925
    %v939 = vpack.c.b16 %v928, %v927
    %v940 = vpack.c.b16 %v930, %v929
    %v941 = vpack.c.b16 %v932, %v931
    %v942 = vpack.c.b16 %v934, %v933
    %951 = vmatprep.subr.bf16.mxu0 0
    %952 = vmatpush1.bf16.msra.mxu0 %v935
    %953 = vmatprep.subr.bf16.mxu0 0
    %954 = vmatpush1.bf16.msra.mxu0 %v936
    %955 = vmatprep.subr.bf16.mxu0 0
    %956 = vmatpush1.bf16.msra.mxu0 %v937
    %957 = vmatprep.subr.bf16.mxu0 0
    %958 = vmatpush1.bf16.msra.mxu0 %v938
    %959 = vmatprep.subr.bf16.mxu0 0
    %960 = vmatpush1.bf16.msra.mxu0 %v939
    %961 = vmatprep.subr.bf16.mxu0 0
    %962 = vmatpush1.bf16.msra.mxu0 %v940
    %963 = vmatprep.subr.bf16.mxu0 0
    %964 = vmatpush1.bf16.msra.mxu0 %v941
    %965 = vmatprep.subr.bf16.mxu0 0
    %966 = vmatpush1.bf16.msra.mxu0 %v942
    %967 = vmatprep.subr.bf16.mxu0 0
    %968 = vmatpush1.bf16.msra.mxu0 0
    %969 = vmatprep.subr.bf16.mxu0 0
    %970 = vmatpush1.bf16.msra.mxu0 0
    %971 = vmatprep.subr.bf16.mxu0 0
    %972 = vmatpush1.bf16.msra.mxu0 0
    %973 = vmatprep.subr.bf16.mxu0 0
    %974 = vmatpush1.bf16.msra.mxu0 0
    %975 = vmatprep.subr.bf16.mxu0 0
    %976 = vmatpush1.bf16.msra.mxu0 0
    %977 = vmatprep.subr.bf16.mxu0 0
    %978 = vmatpush1.bf16.msra.mxu0 0
    %979 = vmatprep.subr.bf16.mxu0 0
    %980 = vmatpush1.bf16.msra.mxu0 0
    %981 = vmatprep.subr.bf16.mxu0 0
    %982 = vmatpush1.bf16.msra.mxu0 0
    %983 = vmatprep.mubr.bf16.mxu0 0
    %984 = vmatmul.mubr.bf16.gmra.mrb[0].mxu0 %v879
    %v985 = vpop.f32.mrb[0].mxu0
    %v986 = vadd.f32 %v901, %v985
    %v987 = vpop.f32.mrb[0].mxu0
    %v988 = vpop.f32.mrb[0].mxu0
    %v989 = vadd.f32 %v901, %v988
    %v990 = vpop.f32.mrb[0].mxu0
    %991 = vdwg.mxu0
    %v992 = vadd.f32 %v762, %v986
    %v993 = vadd.f32 %v763, %v989
    %994 = vadd.xlane.f32.xlu0 %v992
    %v995 = vpop.xlane.xlu0 %994
    %996 = vadd.xlane.f32.xlu0 %v993
    %v997 = vpop.xlane.xlu0 %996
    %v998 = vmul.f32 %v995, 0.03125
    %v999 = vmul.f32 %v997, 0.03125
    %v1000 = vmul.f32 %v992, %v992
    %v1001 = vmul.f32 %v993, %v993
    %1002 = vadd.xlane.f32.xlu0 %v1000
    %v1003 = vpop.xlane.xlu0 %1002
    %1004 = vadd.xlane.f32.xlu0 %v1001
    %v1005 = vpop.xlane.xlu0 %1004
    %v1006 = vmul.f32 %v1003, 0.03125
    %v1007 = vmul.f32 %v1005, 0.03125
    %v1008 = vmul.f32 %v998, %v998
    %v1009 = vmul.f32 %v999, %v999
    %v1010 = vsub.f32 %v1006, %v1008
    %v1011 = vsub.f32 %v1007, %v1009
    %v1012 = vmax.f32 %v1010, 0.0
    %v1013 = vmax.f32 %v1011, 0.0
    %v1014 = vsub.f32 %v992, %v998
    %v1015 = vsub.f32 %v993, %v999
    %v1016 = vadd.f32 %v1012, 1e-05
    %v1017 = vadd.f32 %v1013, 1e-05
    %v1018 = vrsqrt.pop %v1016
    %v1019 = vrsqrt.pop %v1017
    %v1020 = vmul.f32 %v1014, %v1018
    %v1021 = vmul.f32 %v1015, %v1019
    %v1022 = vld [vmem:[%s12] sm:$0x1]
    %v1024 = vlaneseq
    %v1025 = vshrl.u32 %v1024, 7
    %v1026 = vsub.s32 0, %v1025
    %v1027 = vrot.slane %v1022, %v1026
    %v1029 = vmul.f32 %v1020, %v1027
    %v1030 = vmul.f32 %v1021, %v1027
    %v1031 = vld [vmem:[%s13] sm:$0x1]
    %v1033 = vlaneseq
    %v1034 = vshrl.u32 %v1033, 7
    %v1035 = vsub.s32 0, %v1034
    %v1036 = vrot.slane %v1031, %v1035
    %v1038 = vadd.f32 %v1029, %v1036
    %v1039 = vadd.f32 %v1030, %v1036
    %1040 = vst [vmem:[#allocation11] sm:$0xff] %v1038
    %1041 = vst [vmem:[#allocation11 + $0x8] sm:$0xff] %v1039
    // Predicated region
    $region78: #{tpu_custom_call.1} parent=1 // pred_check
      _
    $region79: #{tpu_custom_call.1} parent=1 // pred_check_branch
      %1043 = sbr.rel (0) target = $region81
    $region80: #{tpu_custom_call.1} parent=1 // pred_region
      %s1045 = ssub.s32 256, 256
      %1046 = vsyncadd [#allocation4], %s1045
      %s1047 = sshll.u32 [#allocation11], 4
      %s1048 = int_to_ptr.vmem [resolvable:$true] %s1047
      %1053 = dma.vmem_to_hbm [thread:$0]  %s1048, 256, %s14, [#allocation4], 128, 128, 8
    $region81: #{tpu_custom_call.1} parent=1 // pred_fallthru
      _
    // Predicated region
    $region82: #{tpu_custom_call.1} parent=1 // pred_check
      _
    $region83: #{tpu_custom_call.1} parent=1 // pred_check_branch
      %1055 = sbr.rel (0) target = $region85
    $region84: #{tpu_custom_call.1} parent=1 // pred_region
      %1056 = dma.done [#allocation4], 256
    $region85: #{tpu_custom_call.1} parent=1 // pred_fallthru
      _
    %1057 = vsyncpa [#allocation3], 1
    %1058 = vsyncpa [#allocation6], 1
    %1059 = vsyncpa [#allocation9], 1
    %1060 = vsyncpa [#allocation4], 1

</llo_original>
